<compile_context>
chip_gen: v7x
topology: tpu7x:2x2x1
jax: 0.10.0
libtpu: 0.0.40
codegen_flags: <defaults>
</compile_context>

<pallas_src>
import functools

import jax
import jax.numpy as jnp
from jax.experimental import pallas as pl
from jax.experimental.pallas import tpu as pltpu


def _mlp_kernel(x_ref, w1_ref, b1_ref, w2_ref, b2_ref, w3_ref, b3_ref, o_ref):
    # x arrives as f32 (no wrapper-side convert); cast to bf16 in VMEM right
    # before the MXU dot (VPU work, hidden under the x DMA).
    x = x_ref[...].astype(jnp.bfloat16)
    # ---- fc1 + ReLU: bf16 MXU inputs, f32 accumulation -------------------
    h1 = jnp.dot(x, w1_ref[...], preferred_element_type=jnp.float32)
    h1 = jnp.maximum(h1 + b1_ref[...], 0.0)
    # ---- fc2 + ReLU -------------------------------------------------------
    h2 = jnp.dot(h1.astype(jnp.bfloat16), w2_ref[...],
                 preferred_element_type=jnp.float32)
    h2 = jnp.maximum(h2 + b2_ref[...], 0.0)
    # ---- fc3 (out_features == 1) as a lane reduction + sigmoid ------------
    # w3_ref is (1, 128); logits = sum_k h2[:, k] * w3[0, k] + b3
    logits = jnp.sum(h2 * w3_ref[...], axis=-1, keepdims=True) + b3_ref[0, 0]
    o_ref[...] = jax.nn.sigmoid(logits)


def _round_up(n, m):
    return ((n + m - 1) // m) * m


@functools.partial(jax.jit, static_argnames=("block_b",))
def discriminator_forward(x, params, block_b=1024):
    """x: any shape that flattens to (-1, d_in*d_in)."""
    w1, b1, w2, b2, w3, b3 = params
    d_feat = w1.shape[0]
    H = w1.shape[1]

    # torch: x.view(-1, d_in*d_in) — layout-preserving reshape, no copy/cast.
    xf = x.reshape(-1, d_feat)
    B = xf.shape[0]

    # Tile sizing: as large as block_b and a multiple of 128 (clean MXU feeds,
    # unmasked loads/stores).  Small batches get a single (possibly partial)
    # block.  Ragged tail: the last block simply overhangs; no jnp.pad.
    bb = min(block_b, _round_up(B, 8))
    if bb >= 128:
        bb = (bb // 128) * 128
    grid = (pl.cdiv(B, bb),)

    out = pl.pallas_call(
        _mlp_kernel,
        out_shape=jax.ShapeDtypeStruct((B, 1), jnp.float32),
        grid=grid,
        in_specs=[
            # x: the only streamed operand (f32, default 2-deep buffering).
            pl.BlockSpec((bb, d_feat), lambda i: (i, 0)),
            # Weights/biases: constant index_map -> stay resident in VMEM.
            pl.BlockSpec((d_feat, H), lambda i: (0, 0)),   # W1^T (bf16)
            pl.BlockSpec((1, H), lambda i: (0, 0)),        # b1   (f32)
            pl.BlockSpec((H, H), lambda i: (0, 0)),        # W2^T (bf16)
            pl.BlockSpec((1, H), lambda i: (0, 0)),        # b2   (f32)
            pl.BlockSpec((1, H), lambda i: (0, 0)),        # W3 row (f32)
            pl.BlockSpec(memory_space=pltpu.MemorySpace.SMEM),  # b3 scalar
        ],
        out_specs=pl.BlockSpec((bb, 1), lambda i: (i, 0)),
        compiler_params=pltpu.CompilerParams(
            dimension_semantics=("parallel",),
            # bb=1024 f32 x tiles: 2 x 16 MiB + ~2 MiB resident weights.
            # Fits v7x's 64 MiB VMEM with headroom (trivial on v5e/v6e).
            vmem_limit_bytes=40 * 1024 * 1024),
    )(xf, w1, b1, w2, b2, w3, b3)
    return out


def init_params(key, d_in):
    """Deterministic PyTorch-style init: U(-1/sqrt(fan_in), 1/sqrt(fan_in))."""
    d_feat = d_in * d_in
    H = 128
    ks = jax.random.split(key, 6)

    def uni(k, shape, fan_in):
        bound = 1.0 / jnp.sqrt(fan_in)
        return jax.random.uniform(k, shape, jnp.float32, -bound, bound)

    # Linear weights stored already transposed (in, out); W1/W2 stored bf16
    # once here so the jitted forward never re-converts them per call.
    w1 = uni(ks[0], (d_feat, H), d_feat).astype(jnp.bfloat16)
    b1 = uni(ks[1], (1, H), d_feat)
    w2 = uni(ks[2], (H, H), H).astype(jnp.bfloat16)
    b2 = uni(ks[3], (1, H), H)
    w3 = uni(ks[4], (1, H), H)          # fc3 weight as a single row
    b3 = uni(ks[5], (1, 1), H)
    return (w1, b1, w2, b2, w3, b3)


def reference_forward(x, params):
    w1, b1, w2, b2, w3, b3 = params
    xf = x.reshape(-1, w1.shape[0]).astype(jnp.float32)
    h1 = jnp.maximum(xf @ w1.astype(jnp.float32) + b1, 0.0)
    h2 = jnp.maximum(h1 @ w2.astype(jnp.float32) + b2, 0.0)
    return jax.nn.sigmoid(jnp.sum(h2 * w3, axis=-1, keepdims=True) + b3)


if __name__ == "__main__":
    # Module spec: D(d_in=64) -> flattened feature dim 64*64 = 4096.
    d_in = 64

    key = jax.random.PRNGKey(0)
    k_x, k_p = jax.random.split(key)
    params = init_params(k_p, d_in)

    # batch=32 exercises an exact tile; batch=37 exercises the ragged
    # (overhanging, masked) last tile that replaced the jnp.pad path.
    for batch in (32, 37):
        x = jax.random.normal(k_x, (batch, d_in, d_in), jnp.float32)
        out = jax.block_until_ready(discriminator_forward(x, params))
        ref = reference_forward(x, params)
        assert out.shape == (batch, 1)
        # bf16 x/h1 casts for the MXU (f32 accumulation) -> relaxed tolerance.
        assert jnp.allclose(out, ref, atol=2e-2, rtol=2e-2), \
            (batch, float(jnp.max(jnp.abs(out - ref))))

    print("KERNEL_OK")
</pallas_src>

<mosaic_0001>
module attributes {stable_mosaic.version = 11 : i64} {
  func.func @_mlp_kernel(%arg0: i32, %arg1: memref<32x4096xf32, #tpu.memory_space<vmem>>, %arg2: memref<4096x128xbf16, #tpu.memory_space<vmem>>, %arg3: memref<1x128xf32, #tpu.memory_space<vmem>>, %arg4: memref<128x128xbf16, #tpu.memory_space<vmem>>, %arg5: memref<1x128xf32, #tpu.memory_space<vmem>>, %arg6: memref<1x128xf32, #tpu.memory_space<vmem>>, %arg7: memref<1x1xf32, #tpu.memory_space<smem>>, %arg8: memref<32x1xf32, #tpu.memory_space<vmem>>) attributes {dimension_semantics = [#tpu.dimension_semantics<parallel>], iteration_bounds = array<i64: 1>, scalar_prefetch = 0 : i64, scratch_operands = 0 : i64, tpu.core_type = #tpu.core_type<tc>, window_params = [{transform_indices = @transform_0, window_bounds = array<i64: 32, 4096>}, {pipeline_mode = #tpu.pipeline_mode<synchronous>, transform_indices = @transform_1, window_bounds = array<i64: 4096, 128>}, {pipeline_mode = #tpu.pipeline_mode<synchronous>, transform_indices = @transform_2, window_bounds = array<i64: 1, 128>}, {pipeline_mode = #tpu.pipeline_mode<synchronous>, transform_indices = @transform_3, window_bounds = array<i64: 128, 128>}, {pipeline_mode = #tpu.pipeline_mode<synchronous>, transform_indices = @transform_4, window_bounds = array<i64: 1, 128>}, {pipeline_mode = #tpu.pipeline_mode<synchronous>, transform_indices = @transform_5, window_bounds = array<i64: 1, 128>}, {transform_indices = @transform_6, window_bounds = array<i64: 1, 1>}, {transform_indices = @transform_7, window_bounds = array<i64: 32, 1>}]} {
    %c0 = arith.constant 0 : index
    %c0_0 = arith.constant 0 : index
    %0 = vector.load %arg1[%c0, %c0_0] : memref<32x4096xf32, #tpu.memory_space<vmem>>, vector<32x4096xf32>
    %1 = arith.truncf %0 : vector<32x4096xf32> to vector<32x4096xbf16>
    %c0_1 = arith.constant 0 : index
    %c0_2 = arith.constant 0 : index
    %2 = vector.load %arg2[%c0_1, %c0_2] : memref<4096x128xbf16, #tpu.memory_space<vmem>>, vector<4096x128xbf16>
    %cst = arith.constant dense<0.000000e+00> : vector<32x128xf32>
    %3 = tpu.matmul %1, %2, %cst {dimension_numbers = #tpu.dot_dimension_numbers<[1], [0], [0], [1], [0, 0, 1, 1], [], []>} : vector<32x4096xbf16>, vector<4096x128xbf16>, vector<32x128xf32> -> vector<32x128xf32>
    %c0_3 = arith.constant 0 : index
    %c0_4 = arith.constant 0 : index
    %4 = vector.load %arg3[%c0_3, %c0_4] : memref<1x128xf32, #tpu.memory_space<vmem>>, vector<1x128xf32>
    %5 = vector.broadcast %4 : vector<1x128xf32> to vector<32x128xf32>
    %6 = arith.addf %3, %5 : vector<32x128xf32>
    %cst_5 = arith.constant 0.000000e+00 : f32
    %7 = vector.broadcast %cst_5 : f32 to vector<32x128xf32>
    %8 = arith.maximumf %6, %7 : vector<32x128xf32>
    %9 = arith.truncf %8 : vector<32x128xf32> to vector<32x128xbf16>
    %c0_6 = arith.constant 0 : index
    %c0_7 = arith.constant 0 : index
    %10 = vector.load %arg4[%c0_6, %c0_7] : memref<128x128xbf16, #tpu.memory_space<vmem>>, vector<128x128xbf16>
    %cst_8 = arith.constant dense<0.000000e+00> : vector<32x128xf32>
    %11 = tpu.matmul %9, %10, %cst_8 {dimension_numbers = #tpu.dot_dimension_numbers<[1], [0], [0], [1], [0, 0, 1, 1], [], []>} : vector<32x128xbf16>, vector<128x128xbf16>, vector<32x128xf32> -> vector<32x128xf32>
    %c0_9 = arith.constant 0 : index
    %c0_10 = arith.constant 0 : index
    %12 = vector.load %arg5[%c0_9, %c0_10] : memref<1x128xf32, #tpu.memory_space<vmem>>, vector<1x128xf32>
    %13 = vector.broadcast %12 : vector<1x128xf32> to vector<32x128xf32>
    %14 = arith.addf %11, %13 : vector<32x128xf32>
    %cst_11 = arith.constant 0.000000e+00 : f32
    %15 = vector.broadcast %cst_11 : f32 to vector<32x128xf32>
    %16 = arith.maximumf %14, %15 : vector<32x128xf32>
    %c0_12 = arith.constant 0 : index
    %c0_13 = arith.constant 0 : index
    %17 = vector.load %arg6[%c0_12, %c0_13] : memref<1x128xf32, #tpu.memory_space<vmem>>, vector<1x128xf32>
    %18 = vector.broadcast %17 : vector<1x128xf32> to vector<32x128xf32>
    %19 = arith.mulf %16, %18 : vector<32x128xf32>
    %cst_14 = arith.constant dense<0.000000e+00> : vector<32xf32>
    %20 = vector.multi_reduction <add>, %19, %cst_14 [1] : vector<32x128xf32> to vector<32xf32>
    %21 = vector.shape_cast %20 : vector<32xf32> to vector<32x1xf32>
    %c0_15 = arith.constant 0 : index
    %c0_16 = arith.constant 0 : index
    %22 = memref.load %arg7[%c0_15, %c0_16] : memref<1x1xf32, #tpu.memory_space<smem>>
    %23 = vector.broadcast %22 : f32 to vector<32x1xf32>
    %24 = arith.addf %21, %23 : vector<32x1xf32>
    %25 = arith.negf %24 : vector<32x1xf32>
    %26 = math.exp %25 : vector<32x1xf32>
    %cst_17 = arith.constant 1.000000e+00 : f32
    %27 = vector.broadcast %cst_17 : f32 to vector<32x1xf32>
    %28 = arith.addf %27, %26 : vector<32x1xf32>
    %29 = arith.divf %27, %28 : vector<32x1xf32>
    %c0_18 = arith.constant 0 : index
    %c0_19 = arith.constant 0 : index
    %30 = vector.load %arg8[%c0_18, %c0_19] : memref<32x1xf32, #tpu.memory_space<vmem>>, vector<32x1xf32>
    tpu.vector_store %arg8[%c0_18, %c0_19], %29 {strides = array<i32>} : memref<32x1xf32, #tpu.memory_space<vmem>>, vector<32x1xf32>,
    return
  }
  func.func @transform_0(%arg0: i32) -> (i32, i32) {
    %c0_i32 = arith.constant 0 : i32
    %c0_i32_0 = arith.constant 0 : i32
    return %arg0, %c0_i32 : i32, i32
  }
  func.func @transform_1(%arg0: i32) -> (i32, i32) {
    %c0_i32 = arith.constant 0 : i32
    %c0_i32_0 = arith.constant 0 : i32
    %c0_i32_1 = arith.constant 0 : i32
    return %c0_i32, %c0_i32_0 : i32, i32
  }
  func.func @transform_2(%arg0: i32) -> (i32, i32) {
    %c0_i32 = arith.constant 0 : i32
    %c0_i32_0 = arith.constant 0 : i32
    %c0_i32_1 = arith.constant 0 : i32
    return %c0_i32, %c0_i32_0 : i32, i32
  }
  func.func @transform_3(%arg0: i32) -> (i32, i32) {
    %c0_i32 = arith.constant 0 : i32
    %c0_i32_0 = arith.constant 0 : i32
    %c0_i32_1 = arith.constant 0 : i32
    return %c0_i32, %c0_i32_0 : i32, i32
  }
  func.func @transform_4(%arg0: i32) -> (i32, i32) {
    %c0_i32 = arith.constant 0 : i32
    %c0_i32_0 = arith.constant 0 : i32
    %c0_i32_1 = arith.constant 0 : i32
    return %c0_i32, %c0_i32_0 : i32, i32
  }
  func.func @transform_5(%arg0: i32) -> (i32, i32) {
    %c0_i32 = arith.constant 0 : i32
    %c0_i32_0 = arith.constant 0 : i32
    %c0_i32_1 = arith.constant 0 : i32
    return %c0_i32, %c0_i32_0 : i32, i32
  }
  func.func @transform_6(%arg0: i32) -> (i32, i32) {
    %c0_i32 = arith.constant 0 : i32
    %c0_i32_0 = arith.constant 0 : i32
    %c0_i32_1 = arith.constant 0 : i32
    return %c0_i32, %c0_i32_0 : i32, i32
  }
  func.func @transform_7(%arg0: i32) -> (i32, i32) {
    %c0_i32 = arith.constant 0 : i32
    %c0_i32_0 = arith.constant 0 : i32
    return %arg0, %c0_i32 : i32, i32
  }
}

</mosaic_0001>

<llo_original>
// kernel: discriminator_forward.1
$region0: #{discriminator_forward.1}
  #allocation0 [shape = 'u32[]', space=smem, size = 0x4, offset = 0x4, fixed_abs, tag = 'smem constant byte address 0x4 - core index']
  #allocation1 [shape = 'u32[144,128]{1,0:T(1,128)}', space=vmem, size = 0x12000, scoped, tag = 'internal scratch']
  #allocation2 [shape = 'f32[1,1]{1,0:T(1,128)S(6)}', space=smem, size = 0x200, scoped, tag = 'scoped memory for discriminator_forward.1']
  %s0 = inlined_call_operand.vmem [shape: f32[32,4096], index: 0, kind: input, shape index: {}]
  %s1 = inlined_call_operand.vmem [shape: bf16[4096,128], index: 1, kind: input, shape index: {}]
  %s2 = inlined_call_operand.vmem [shape: f32[1,128], index: 2, kind: input, shape index: {}]
  %s3 = inlined_call_operand.vmem [shape: bf16[128,128], index: 3, kind: input, shape index: {}]
  %s4 = inlined_call_operand.vmem [shape: f32[1,128], index: 4, kind: input, shape index: {}]
  %s5 = inlined_call_operand.vmem [shape: f32[1,128], index: 5, kind: input, shape index: {}]
  %s6 = inlined_call_operand.<no memory space> [shape: f32[1,1], index: 6, kind: input, shape index: {}]
  %s7 = inlined_call_operand.vmem [shape: f32[32,1], index: 7, kind: output, shape index: {}]
  %s8 = sld [smem:[#allocation0]]
  $region38: #{discriminator_forward.1} parent=0
    _
  %s10 = ssub.s32 1, %s8
  %s11 = scalar_select 0, %s10, %s8
  %12 = sst [smem:[#allocation2]] %s6
  // Predicated region
  $region2: #{discriminator_forward.1} parent=0 // pred_check
    _
  $region3: #{discriminator_forward.1} parent=0 // pred_check_branch
    %14 = sbr.rel (0) target = $region5
  $region4: #{discriminator_forward.1} parent=0 // pred_region
    _
  $region5: #{discriminator_forward.1} parent=0 // pred_fallthru
    _
  // Predicated region
  $region6: #{discriminator_forward.1} parent=0 // pred_check
    _
  $region7: #{discriminator_forward.1} parent=0 // pred_check_branch
    %16 = sbr.rel (0) target = $region9
  $region8: #{discriminator_forward.1} parent=0 // pred_region
    _
  $region9: #{discriminator_forward.1} parent=0 // pred_fallthru
    _
  // Predicated region
  $region10: #{discriminator_forward.1} parent=0 // pred_check
    _
  $region11: #{discriminator_forward.1} parent=0 // pred_check_branch
    %18 = sbr.rel (0) target = $region13
  $region12: #{discriminator_forward.1} parent=0 // pred_region
    _
  $region13: #{discriminator_forward.1} parent=0 // pred_fallthru
    _
  // Predicated region
  $region14: #{discriminator_forward.1} parent=0 // pred_check
    _
  $region15: #{discriminator_forward.1} parent=0 // pred_check_branch
    %20 = sbr.rel (0) target = $region17
  $region16: #{discriminator_forward.1} parent=0 // pred_region
    _
  $region17: #{discriminator_forward.1} parent=0 // pred_fallthru
    _
  // Predicated region
  $region18: #{discriminator_forward.1} parent=0 // pred_check
    _
  $region19: #{discriminator_forward.1} parent=0 // pred_check_branch
    %22 = sbr.rel (0) target = $region21
  $region20: #{discriminator_forward.1} parent=0 // pred_region
    _
  $region21: #{discriminator_forward.1} parent=0 // pred_fallthru
    _
  // Predicated region
  $region22: #{discriminator_forward.1} parent=0 // pred_check
    _
  $region23: #{discriminator_forward.1} parent=0 // pred_check_branch
    %24 = sbr.rel (0) target = $region25
  $region24: #{discriminator_forward.1} parent=0 // pred_region
    _
  $region25: #{discriminator_forward.1} parent=0 // pred_fallthru
    _
  // Predicated region
  $region26: #{discriminator_forward.1} parent=0 // pred_check
    _
  $region27: #{discriminator_forward.1} parent=0 // pred_check_branch
    %26 = sbr.rel (0) target = $region29
  $region28: #{discriminator_forward.1} parent=0 // pred_region
    _
  $region29: #{discriminator_forward.1} parent=0 // pred_fallthru
    _
  %v28 = vld [vmem:[%s0] sm:$0xff]
  %v29 = vld [vmem:[%s0 + $0x8] sm:$0xff]
  %v30 = vld [vmem:[%s0 + $0x10] sm:$0xff]
  %v31 = vld [vmem:[%s0 + $0x18] sm:$0xff]
  %v32 = vld [vmem:[%s0 + $0x20] sm:$0xff]
  %v33 = vld [vmem:[%s0 + $0x28] sm:$0xff]
  %v34 = vld [vmem:[%s0 + $0x30] sm:$0xff]
  %v35 = vld [vmem:[%s0 + $0x38] sm:$0xff]
  %v36 = vld [vmem:[%s0 + $0x40] sm:$0xff]
  %v37 = vld [vmem:[%s0 + $0x48] sm:$0xff]
  %v38 = vld [vmem:[%s0 + $0x50] sm:$0xff]
  %v39 = vld [vmem:[%s0 + $0x58] sm:$0xff]
  %v40 = vld [vmem:[%s0 + $0x60] sm:$0xff]
  %v41 = vld [vmem:[%s0 + $0x68] sm:$0xff]
  %v42 = vld [vmem:[%s0 + $0x70] sm:$0xff]
  %v43 = vld [vmem:[%s0 + $0x78] sm:$0xff]
  %v44 = vld [vmem:[%s0 + $0x80] sm:$0xff]
  %v45 = vld [vmem:[%s0 + $0x88] sm:$0xff]
  %v46 = vld [vmem:[%s0 + $0x90] sm:$0xff]
  %v47 = vld [vmem:[%s0 + $0x98] sm:$0xff]
  %v48 = vld [vmem:[%s0 + $0xa0] sm:$0xff]
  %v49 = vld [vmem:[%s0 + $0xa8] sm:$0xff]
  %v50 = vld [vmem:[%s0 + $0xb0] sm:$0xff]
  %v51 = vld [vmem:[%s0 + $0xb8] sm:$0xff]
  %v52 = vld [vmem:[%s0 + $0xc0] sm:$0xff]
  %v53 = vld [vmem:[%s0 + $0xc8] sm:$0xff]
  %v54 = vld [vmem:[%s0 + $0xd0] sm:$0xff]
  %v55 = vld [vmem:[%s0 + $0xd8] sm:$0xff]
  %v56 = vld [vmem:[%s0 + $0xe0] sm:$0xff]
  %v57 = vld [vmem:[%s0 + $0xe8] sm:$0xff]
  %v58 = vld [vmem:[%s0 + $0xf0] sm:$0xff]
  %v59 = vld [vmem:[%s0 + $0xf8] sm:$0xff]
  %v60 = vld [vmem:[%s0 + $0x100] sm:$0xff]
  %v61 = vld [vmem:[%s0 + $0x108] sm:$0xff]
  %v62 = vld [vmem:[%s0 + $0x110] sm:$0xff]
  %v63 = vld [vmem:[%s0 + $0x118] sm:$0xff]
  %v64 = vld [vmem:[%s0 + $0x120] sm:$0xff]
  %v65 = vld [vmem:[%s0 + $0x128] sm:$0xff]
  %v66 = vld [vmem:[%s0 + $0x130] sm:$0xff]
  %v67 = vld [vmem:[%s0 + $0x138] sm:$0xff]
  %v68 = vld [vmem:[%s0 + $0x140] sm:$0xff]
  %v69 = vld [vmem:[%s0 + $0x148] sm:$0xff]
  %v70 = vld [vmem:[%s0 + $0x150] sm:$0xff]
  %v71 = vld [vmem:[%s0 + $0x158] sm:$0xff]
  %v72 = vld [vmem:[%s0 + $0x160] sm:$0xff]
  %v73 = vld [vmem:[%s0 + $0x168] sm:$0xff]
  %v74 = vld [vmem:[%s0 + $0x170] sm:$0xff]
  %v75 = vld [vmem:[%s0 + $0x178] sm:$0xff]
  %v76 = vld [vmem:[%s0 + $0x180] sm:$0xff]
  %v77 = vld [vmem:[%s0 + $0x188] sm:$0xff]
  %v78 = vld [vmem:[%s0 + $0x190] sm:$0xff]
  %v79 = vld [vmem:[%s0 + $0x198] sm:$0xff]
  %v80 = vld [vmem:[%s0 + $0x1a0] sm:$0xff]
  %v81 = vld [vmem:[%s0 + $0x1a8] sm:$0xff]
  %v82 = vld [vmem:[%s0 + $0x1b0] sm:$0xff]
  %v83 = vld [vmem:[%s0 + $0x1b8] sm:$0xff]
  %v84 = vld [vmem:[%s0 + $0x1c0] sm:$0xff]
  %v85 = vld [vmem:[%s0 + $0x1c8] sm:$0xff]
  %v86 = vld [vmem:[%s0 + $0x1d0] sm:$0xff]
  %v87 = vld [vmem:[%s0 + $0x1d8] sm:$0xff]
  %v88 = vld [vmem:[%s0 + $0x1e0] sm:$0xff]
  %v89 = vld [vmem:[%s0 + $0x1e8] sm:$0xff]
  %v90 = vld [vmem:[%s0 + $0x1f0] sm:$0xff]
  %v91 = vld [vmem:[%s0 + $0x1f8] sm:$0xff]
  %v92 = vld [vmem:[%s0 + $0x200] sm:$0xff]
  %v93 = vld [vmem:[%s0 + $0x208] sm:$0xff]
  %v94 = vld [vmem:[%s0 + $0x210] sm:$0xff]
  %v95 = vld [vmem:[%s0 + $0x218] sm:$0xff]
  %v96 = vld [vmem:[%s0 + $0x220] sm:$0xff]
  %v97 = vld [vmem:[%s0 + $0x228] sm:$0xff]
  %v98 = vld [vmem:[%s0 + $0x230] sm:$0xff]
  %v99 = vld [vmem:[%s0 + $0x238] sm:$0xff]
  %v100 = vld [vmem:[%s0 + $0x240] sm:$0xff]
  %v101 = vld [vmem:[%s0 + $0x248] sm:$0xff]
  %v102 = vld [vmem:[%s0 + $0x250] sm:$0xff]
  %v103 = vld [vmem:[%s0 + $0x258] sm:$0xff]
  %v104 = vld [vmem:[%s0 + $0x260] sm:$0xff]
  %v105 = vld [vmem:[%s0 + $0x268] sm:$0xff]
  %v106 = vld [vmem:[%s0 + $0x270] sm:$0xff]
  %v107 = vld [vmem:[%s0 + $0x278] sm:$0xff]
  %v108 = vld [vmem:[%s0 + $0x280] sm:$0xff]
  %v109 = vld [vmem:[%s0 + $0x288] sm:$0xff]
  %v110 = vld [vmem:[%s0 + $0x290] sm:$0xff]
  %v111 = vld [vmem:[%s0 + $0x298] sm:$0xff]
  %v112 = vld [vmem:[%s0 + $0x2a0] sm:$0xff]
  %v113 = vld [vmem:[%s0 + $0x2a8] sm:$0xff]
  %v114 = vld [vmem:[%s0 + $0x2b0] sm:$0xff]
  %v115 = vld [vmem:[%s0 + $0x2b8] sm:$0xff]
  %v116 = vld [vmem:[%s0 + $0x2c0] sm:$0xff]
  %v117 = vld [vmem:[%s0 + $0x2c8] sm:$0xff]
  %v118 = vld [vmem:[%s0 + $0x2d0] sm:$0xff]
  %v119 = vld [vmem:[%s0 + $0x2d8] sm:$0xff]
  %v120 = vld [vmem:[%s0 + $0x2e0] sm:$0xff]
  %v121 = vld [vmem:[%s0 + $0x2e8] sm:$0xff]
  %v122 = vld [vmem:[%s0 + $0x2f0] sm:$0xff]
  %v123 = vld [vmem:[%s0 + $0x2f8] sm:$0xff]
  %v124 = vld [vmem:[%s0 + $0x300] sm:$0xff]
  %v125 = vld [vmem:[%s0 + $0x308] sm:$0xff]
  %v126 = vld [vmem:[%s0 + $0x310] sm:$0xff]
  %v127 = vld [vmem:[%s0 + $0x318] sm:$0xff]
  %v128 = vld [vmem:[%s0 + $0x320] sm:$0xff]
  %v129 = vld [vmem:[%s0 + $0x328] sm:$0xff]
  %v130 = vld [vmem:[%s0 + $0x330] sm:$0xff]
  %v131 = vld [vmem:[%s0 + $0x338] sm:$0xff]
  %v132 = vld [vmem:[%s0 + $0x340] sm:$0xff]
  %v133 = vld [vmem:[%s0 + $0x348] sm:$0xff]
  %v134 = vld [vmem:[%s0 + $0x350] sm:$0xff]
  %v135 = vld [vmem:[%s0 + $0x358] sm:$0xff]
  %v136 = vld [vmem:[%s0 + $0x360] sm:$0xff]
  %v137 = vld [vmem:[%s0 + $0x368] sm:$0xff]
  %v138 = vld [vmem:[%s0 + $0x370] sm:$0xff]
  %v139 = vld [vmem:[%s0 + $0x378] sm:$0xff]
  %v140 = vld [vmem:[%s0 + $0x380] sm:$0xff]
  %v141 = vld [vmem:[%s0 + $0x388] sm:$0xff]
  %v142 = vld [vmem:[%s0 + $0x390] sm:$0xff]
  %v143 = vld [vmem:[%s0 + $0x398] sm:$0xff]
  %v144 = vld [vmem:[%s0 + $0x3a0] sm:$0xff]
  %v145 = vld [vmem:[%s0 + $0x3a8] sm:$0xff]
  %v146 = vld [vmem:[%s0 + $0x3b0] sm:$0xff]
  %v147 = vld [vmem:[%s0 + $0x3b8] sm:$0xff]
  %v148 = vld [vmem:[%s0 + $0x3c0] sm:$0xff]
  %v149 = vld [vmem:[%s0 + $0x3c8] sm:$0xff]
  %v150 = vld [vmem:[%s0 + $0x3d0] sm:$0xff]
  %v151 = vld [vmem:[%s0 + $0x3d8] sm:$0xff]
  %v152 = vld [vmem:[%s0 + $0x3e0] sm:$0xff]
  %v153 = vld [vmem:[%s0 + $0x3e8] sm:$0xff]
  %v154 = vld [vmem:[%s0 + $0x3f0] sm:$0xff]
  %v155 = vld [vmem:[%s0 + $0x3f8] sm:$0xff]
  %v156 = vpack.c.bf16 %v60, %v28
  %v157 = vpack.c.bf16 %v61, %v29
  %v158 = vpack.c.bf16 %v62, %v30
  %v159 = vpack.c.bf16 %v63, %v31
  %v160 = vpack.c.bf16 %v64, %v32
  %v161 = vpack.c.bf16 %v65, %v33
  %v162 = vpack.c.bf16 %v66, %v34
  %v163 = vpack.c.bf16 %v67, %v35
  %v164 = vpack.c.bf16 %v68, %v36
  %v165 = vpack.c.bf16 %v69, %v37
  %v166 = vpack.c.bf16 %v70, %v38
  %v167 = vpack.c.bf16 %v71, %v39
  %v168 = vpack.c.bf16 %v72, %v40
  %v169 = vpack.c.bf16 %v73, %v41
  %v170 = vpack.c.bf16 %v74, %v42
  %v171 = vpack.c.bf16 %v75, %v43
  %v172 = vpack.c.bf16 %v76, %v44
  %v173 = vpack.c.bf16 %v77, %v45
  %v174 = vpack.c.bf16 %v78, %v46
  %v175 = vpack.c.bf16 %v79, %v47
  %v176 = vpack.c.bf16 %v80, %v48
  %v177 = vpack.c.bf16 %v81, %v49
  %v178 = vpack.c.bf16 %v82, %v50
  %v179 = vpack.c.bf16 %v83, %v51
  %v180 = vpack.c.bf16 %v84, %v52
  %v181 = vpack.c.bf16 %v85, %v53
  %v182 = vpack.c.bf16 %v86, %v54
  %v183 = vpack.c.bf16 %v87, %v55
  %v184 = vpack.c.bf16 %v88, %v56
  %v185 = vpack.c.bf16 %v89, %v57
  %v186 = vpack.c.bf16 %v90, %v58
  %v187 = vpack.c.bf16 %v91, %v59
  %v188 = vpack.c.bf16 %v124, %v92
  %v189 = vpack.c.bf16 %v125, %v93
  %v190 = vpack.c.bf16 %v126, %v94
  %v191 = vpack.c.bf16 %v127, %v95
  %v192 = vpack.c.bf16 %v128, %v96
  %v193 = vpack.c.bf16 %v129, %v97
  %v194 = vpack.c.bf16 %v130, %v98
  %v195 = vpack.c.bf16 %v131, %v99
  %v196 = vpack.c.bf16 %v132, %v100
  %v197 = vpack.c.bf16 %v133, %v101
  %v198 = vpack.c.bf16 %v134, %v102
  %v199 = vpack.c.bf16 %v135, %v103
  %v200 = vpack.c.bf16 %v136, %v104
  %v201 = vpack.c.bf16 %v137, %v105
  %v202 = vpack.c.bf16 %v138, %v106
  %v203 = vpack.c.bf16 %v139, %v107
  %v204 = vpack.c.bf16 %v140, %v108
  %v205 = vpack.c.bf16 %v141, %v109
  %v206 = vpack.c.bf16 %v142, %v110
  %v207 = vpack.c.bf16 %v143, %v111
  %v208 = vpack.c.bf16 %v144, %v112
  %v209 = vpack.c.bf16 %v145, %v113
  %v210 = vpack.c.bf16 %v146, %v114
  %v211 = vpack.c.bf16 %v147, %v115
  %v212 = vpack.c.bf16 %v148, %v116
  %v213 = vpack.c.bf16 %v149, %v117
  %v214 = vpack.c.bf16 %v150, %v118
  %v215 = vpack.c.bf16 %v151, %v119
  %v216 = vpack.c.bf16 %v152, %v120
  %v217 = vpack.c.bf16 %v153, %v121
  %v218 = vpack.c.bf16 %v154, %v122
  %v219 = vpack.c.bf16 %v155, %v123
  %v220 = vld [vmem:[%s1] sm:$0xf]
  %v221 = vld [vmem:[%s1 + $0x4] sm:$0xf]
  %v222 = vld [vmem:[%s1 + $0x8] sm:$0xf]
  %v223 = vld [vmem:[%s1 + $0xc] sm:$0xf]
  %v224 = vld [vmem:[%s1 + $0x10] sm:$0xf]
  %v225 = vld [vmem:[%s1 + $0x14] sm:$0xf]
  %v226 = vld [vmem:[%s1 + $0x18] sm:$0xf]
  %v227 = vld [vmem:[%s1 + $0x1c] sm:$0xf]
  %v228 = vld [vmem:[%s1 + $0x20] sm:$0xf]
  %v229 = vld [vmem:[%s1 + $0x24] sm:$0xf]
  %v230 = vld [vmem:[%s1 + $0x28] sm:$0xf]
  %v231 = vld [vmem:[%s1 + $0x2c] sm:$0xf]
  %v232 = vld [vmem:[%s1 + $0x30] sm:$0xf]
  %v233 = vld [vmem:[%s1 + $0x34] sm:$0xf]
  %v234 = vld [vmem:[%s1 + $0x38] sm:$0xf]
  %v235 = vld [vmem:[%s1 + $0x3c] sm:$0xf]
  %v236 = vld [vmem:[%s1 + $0x40] sm:$0xf]
  %v237 = vld [vmem:[%s1 + $0x44] sm:$0xf]
  %v238 = vld [vmem:[%s1 + $0x48] sm:$0xf]
  %v239 = vld [vmem:[%s1 + $0x4c] sm:$0xf]
  %v240 = vld [vmem:[%s1 + $0x50] sm:$0xf]
  %v241 = vld [vmem:[%s1 + $0x54] sm:$0xf]
  %v242 = vld [vmem:[%s1 + $0x58] sm:$0xf]
  %v243 = vld [vmem:[%s1 + $0x5c] sm:$0xf]
  %v244 = vld [vmem:[%s1 + $0x60] sm:$0xf]
  %v245 = vld [vmem:[%s1 + $0x64] sm:$0xf]
  %v246 = vld [vmem:[%s1 + $0x68] sm:$0xf]
  %v247 = vld [vmem:[%s1 + $0x6c] sm:$0xf]
  %v248 = vld [vmem:[%s1 + $0x70] sm:$0xf]
  %v249 = vld [vmem:[%s1 + $0x74] sm:$0xf]
  %v250 = vld [vmem:[%s1 + $0x78] sm:$0xf]
  %v251 = vld [vmem:[%s1 + $0x7c] sm:$0xf]
  %v252 = vld [vmem:[%s1 + $0x80] sm:$0xf]
  %v253 = vld [vmem:[%s1 + $0x84] sm:$0xf]
  %v254 = vld [vmem:[%s1 + $0x88] sm:$0xf]
  %v255 = vld [vmem:[%s1 + $0x8c] sm:$0xf]
  %v256 = vld [vmem:[%s1 + $0x90] sm:$0xf]
  %v257 = vld [vmem:[%s1 + $0x94] sm:$0xf]
  %v258 = vld [vmem:[%s1 + $0x98] sm:$0xf]
  %v259 = vld [vmem:[%s1 + $0x9c] sm:$0xf]
  %v260 = vld [vmem:[%s1 + $0xa0] sm:$0xf]
  %v261 = vld [vmem:[%s1 + $0xa4] sm:$0xf]
  %v262 = vld [vmem:[%s1 + $0xa8] sm:$0xf]
  %v263 = vld [vmem:[%s1 + $0xac] sm:$0xf]
  %v264 = vld [vmem:[%s1 + $0xb0] sm:$0xf]
  %v265 = vld [vmem:[%s1 + $0xb4] sm:$0xf]
  %v266 = vld [vmem:[%s1 + $0xb8] sm:$0xf]
  %v267 = vld [vmem:[%s1 + $0xbc] sm:$0xf]
  %v268 = vld [vmem:[%s1 + $0xc0] sm:$0xf]
  %v269 = vld [vmem:[%s1 + $0xc4] sm:$0xf]
  %v270 = vld [vmem:[%s1 + $0xc8] sm:$0xf]
  %v271 = vld [vmem:[%s1 + $0xcc] sm:$0xf]
  %v272 = vld [vmem:[%s1 + $0xd0] sm:$0xf]
  %v273 = vld [vmem:[%s1 + $0xd4] sm:$0xf]
  %v274 = vld [vmem:[%s1 + $0xd8] sm:$0xf]
  %v275 = vld [vmem:[%s1 + $0xdc] sm:$0xf]
  %v276 = vld [vmem:[%s1 + $0xe0] sm:$0xf]
  %v277 = vld [vmem:[%s1 + $0xe4] sm:$0xf]
  %v278 = vld [vmem:[%s1 + $0xe8] sm:$0xf]
  %v279 = vld [vmem:[%s1 + $0xec] sm:$0xf]
  %v280 = vld [vmem:[%s1 + $0xf0] sm:$0xf]
  %v281 = vld [vmem:[%s1 + $0xf4] sm:$0xf]
  %v282 = vld [vmem:[%s1 + $0xf8] sm:$0xf]
  %v283 = vld [vmem:[%s1 + $0xfc] sm:$0xf]
  %v284 = vld [vmem:[%s1 + $0x100] sm:$0xf]
  %v285 = vld [vmem:[%s1 + $0x104] sm:$0xf]
  %v286 = vld [vmem:[%s1 + $0x108] sm:$0xf]
  %v287 = vld [vmem:[%s1 + $0x10c] sm:$0xf]
  %v288 = vld [vmem:[%s1 + $0x110] sm:$0xf]
  %v289 = vld [vmem:[%s1 + $0x114] sm:$0xf]
  %v290 = vld [vmem:[%s1 + $0x118] sm:$0xf]
  %v291 = vld [vmem:[%s1 + $0x11c] sm:$0xf]
  %v292 = vld [vmem:[%s1 + $0x120] sm:$0xf]
  %v293 = vld [vmem:[%s1 + $0x124] sm:$0xf]
  %v294 = vld [vmem:[%s1 + $0x128] sm:$0xf]
  %v295 = vld [vmem:[%s1 + $0x12c] sm:$0xf]
  %v296 = vld [vmem:[%s1 + $0x130] sm:$0xf]
  %v297 = vld [vmem:[%s1 + $0x134] sm:$0xf]
  %v298 = vld [vmem:[%s1 + $0x138] sm:$0xf]
  %v299 = vld [vmem:[%s1 + $0x13c] sm:$0xf]
  %v300 = vld [vmem:[%s1 + $0x140] sm:$0xf]
  %v301 = vld [vmem:[%s1 + $0x144] sm:$0xf]
  %v302 = vld [vmem:[%s1 + $0x148] sm:$0xf]
  %v303 = vld [vmem:[%s1 + $0x14c] sm:$0xf]
  %v304 = vld [vmem:[%s1 + $0x150] sm:$0xf]
  %v305 = vld [vmem:[%s1 + $0x154] sm:$0xf]
  %v306 = vld [vmem:[%s1 + $0x158] sm:$0xf]
  %v307 = vld [vmem:[%s1 + $0x15c] sm:$0xf]
  %v308 = vld [vmem:[%s1 + $0x160] sm:$0xf]
  %v309 = vld [vmem:[%s1 + $0x164] sm:$0xf]
  %v310 = vld [vmem:[%s1 + $0x168] sm:$0xf]
  %v311 = vld [vmem:[%s1 + $0x16c] sm:$0xf]
  %v312 = vld [vmem:[%s1 + $0x170] sm:$0xf]
  %v313 = vld [vmem:[%s1 + $0x174] sm:$0xf]
  %v314 = vld [vmem:[%s1 + $0x178] sm:$0xf]
  %v315 = vld [vmem:[%s1 + $0x17c] sm:$0xf]
  %v316 = vld [vmem:[%s1 + $0x180] sm:$0xf]
  %v317 = vld [vmem:[%s1 + $0x184] sm:$0xf]
  %v318 = vld [vmem:[%s1 + $0x188] sm:$0xf]
  %v319 = vld [vmem:[%s1 + $0x18c] sm:$0xf]
  %v320 = vld [vmem:[%s1 + $0x190] sm:$0xf]
  %v321 = vld [vmem:[%s1 + $0x194] sm:$0xf]
  %v322 = vld [vmem:[%s1 + $0x198] sm:$0xf]
  %v323 = vld [vmem:[%s1 + $0x19c] sm:$0xf]
  %v324 = vld [vmem:[%s1 + $0x1a0] sm:$0xf]
  %v325 = vld [vmem:[%s1 + $0x1a4] sm:$0xf]
  %v326 = vld [vmem:[%s1 + $0x1a8] sm:$0xf]
  %v327 = vld [vmem:[%s1 + $0x1ac] sm:$0xf]
  %v328 = vld [vmem:[%s1 + $0x1b0] sm:$0xf]
  %v329 = vld [vmem:[%s1 + $0x1b4] sm:$0xf]
  %v330 = vld [vmem:[%s1 + $0x1b8] sm:$0xf]
  %v331 = vld [vmem:[%s1 + $0x1bc] sm:$0xf]
  %v332 = vld [vmem:[%s1 + $0x1c0] sm:$0xf]
  %v333 = vld [vmem:[%s1 + $0x1c4] sm:$0xf]
  %v334 = vld [vmem:[%s1 + $0x1c8] sm:$0xf]
  %v335 = vld [vmem:[%s1 + $0x1cc] sm:$0xf]
  %v336 = vld [vmem:[%s1 + $0x1d0] sm:$0xf]
  %v337 = vld [vmem:[%s1 + $0x1d4] sm:$0xf]
  %v338 = vld [vmem:[%s1 + $0x1d8] sm:$0xf]
  %v339 = vld [vmem:[%s1 + $0x1dc] sm:$0xf]
  %v340 = vld [vmem:[%s1 + $0x1e0] sm:$0xf]
  %v341 = vld [vmem:[%s1 + $0x1e4] sm:$0xf]
  %v342 = vld [vmem:[%s1 + $0x1e8] sm:$0xf]
  %v343 = vld [vmem:[%s1 + $0x1ec] sm:$0xf]
  %v344 = vld [vmem:[%s1 + $0x1f0] sm:$0xf]
  %v345 = vld [vmem:[%s1 + $0x1f4] sm:$0xf]
  %v346 = vld [vmem:[%s1 + $0x1f8] sm:$0xf]
  %v347 = vld [vmem:[%s1 + $0x1fc] sm:$0xf]
  %v348 = vld [vmem:[%s1 + $0x200] sm:$0xf]
  %v349 = vld [vmem:[%s1 + $0x204] sm:$0xf]
  %v350 = vld [vmem:[%s1 + $0x208] sm:$0xf]
  %v351 = vld [vmem:[%s1 + $0x20c] sm:$0xf]
  %v352 = vld [vmem:[%s1 + $0x210] sm:$0xf]
  %v353 = vld [vmem:[%s1 + $0x214] sm:$0xf]
  %v354 = vld [vmem:[%s1 + $0x218] sm:$0xf]
  %v355 = vld [vmem:[%s1 + $0x21c] sm:$0xf]
  %v356 = vld [vmem:[%s1 + $0x220] sm:$0xf]
  %v357 = vld [vmem:[%s1 + $0x224] sm:$0xf]
  %v358 = vld [vmem:[%s1 + $0x228] sm:$0xf]
  %v359 = vld [vmem:[%s1 + $0x22c] sm:$0xf]
  %v360 = vld [vmem:[%s1 + $0x230] sm:$0xf]
  %v361 = vld [vmem:[%s1 + $0x234] sm:$0xf]
  %v362 = vld [vmem:[%s1 + $0x238] sm:$0xf]
  %v363 = vld [vmem:[%s1 + $0x23c] sm:$0xf]
  %v364 = vld [vmem:[%s1 + $0x240] sm:$0xf]
  %v365 = vld [vmem:[%s1 + $0x244] sm:$0xf]
  %v366 = vld [vmem:[%s1 + $0x248] sm:$0xf]
  %v367 = vld [vmem:[%s1 + $0x24c] sm:$0xf]
  %v368 = vld [vmem:[%s1 + $0x250] sm:$0xf]
  %v369 = vld [vmem:[%s1 + $0x254] sm:$0xf]
  %v370 = vld [vmem:[%s1 + $0x258] sm:$0xf]
  %v371 = vld [vmem:[%s1 + $0x25c] sm:$0xf]
  %v372 = vld [vmem:[%s1 + $0x260] sm:$0xf]
  %v373 = vld [vmem:[%s1 + $0x264] sm:$0xf]
  %v374 = vld [vmem:[%s1 + $0x268] sm:$0xf]
  %v375 = vld [vmem:[%s1 + $0x26c] sm:$0xf]
  %v376 = vld [vmem:[%s1 + $0x270] sm:$0xf]
  %v377 = vld [vmem:[%s1 + $0x274] sm:$0xf]
  %v378 = vld [vmem:[%s1 + $0x278] sm:$0xf]
  %v379 = vld [vmem:[%s1 + $0x27c] sm:$0xf]
  %v380 = vld [vmem:[%s1 + $0x280] sm:$0xf]
  %v381 = vld [vmem:[%s1 + $0x284] sm:$0xf]
  %v382 = vld [vmem:[%s1 + $0x288] sm:$0xf]
  %v383 = vld [vmem:[%s1 + $0x28c] sm:$0xf]
  %v384 = vld [vmem:[%s1 + $0x290] sm:$0xf]
  %v385 = vld [vmem:[%s1 + $0x294] sm:$0xf]
  %v386 = vld [vmem:[%s1 + $0x298] sm:$0xf]
  %v387 = vld [vmem:[%s1 + $0x29c] sm:$0xf]
  %v388 = vld [vmem:[%s1 + $0x2a0] sm:$0xf]
  %v389 = vld [vmem:[%s1 + $0x2a4] sm:$0xf]
  %v390 = vld [vmem:[%s1 + $0x2a8] sm:$0xf]
  %v391 = vld [vmem:[%s1 + $0x2ac] sm:$0xf]
  %v392 = vld [vmem:[%s1 + $0x2b0] sm:$0xf]
  %v393 = vld [vmem:[%s1 + $0x2b4] sm:$0xf]
  %v394 = vld [vmem:[%s1 + $0x2b8] sm:$0xf]
  %v395 = vld [vmem:[%s1 + $0x2bc] sm:$0xf]
  %v396 = vld [vmem:[%s1 + $0x2c0] sm:$0xf]
  %v397 = vld [vmem:[%s1 + $0x2c4] sm:$0xf]
  %v398 = vld [vmem:[%s1 + $0x2c8] sm:$0xf]
  %v399 = vld [vmem:[%s1 + $0x2cc] sm:$0xf]
  %v400 = vld [vmem:[%s1 + $0x2d0] sm:$0xf]
  %v401 = vld [vmem:[%s1 + $0x2d4] sm:$0xf]
  %v402 = vld [vmem:[%s1 + $0x2d8] sm:$0xf]
  %v403 = vld [vmem:[%s1 + $0x2dc] sm:$0xf]
  %v404 = vld [vmem:[%s1 + $0x2e0] sm:$0xf]
  %v405 = vld [vmem:[%s1 + $0x2e4] sm:$0xf]
  %v406 = vld [vmem:[%s1 + $0x2e8] sm:$0xf]
  %v407 = vld [vmem:[%s1 + $0x2ec] sm:$0xf]
  %v408 = vld [vmem:[%s1 + $0x2f0] sm:$0xf]
  %v409 = vld [vmem:[%s1 + $0x2f4] sm:$0xf]
  %v410 = vld [vmem:[%s1 + $0x2f8] sm:$0xf]
  %v411 = vld [vmem:[%s1 + $0x2fc] sm:$0xf]
  %v412 = vld [vmem:[%s1 + $0x300] sm:$0xf]
  %v413 = vld [vmem:[%s1 + $0x304] sm:$0xf]
  %v414 = vld [vmem:[%s1 + $0x308] sm:$0xf]
  %v415 = vld [vmem:[%s1 + $0x30c] sm:$0xf]
  %v416 = vld [vmem:[%s1 + $0x310] sm:$0xf]
  %v417 = vld [vmem:[%s1 + $0x314] sm:$0xf]
  %v418 = vld [vmem:[%s1 + $0x318] sm:$0xf]
  %v419 = vld [vmem:[%s1 + $0x31c] sm:$0xf]
  %v420 = vld [vmem:[%s1 + $0x320] sm:$0xf]
  %v421 = vld [vmem:[%s1 + $0x324] sm:$0xf]
  %v422 = vld [vmem:[%s1 + $0x328] sm:$0xf]
  %v423 = vld [vmem:[%s1 + $0x32c] sm:$0xf]
  %v424 = vld [vmem:[%s1 + $0x330] sm:$0xf]
  %v425 = vld [vmem:[%s1 + $0x334] sm:$0xf]
  %v426 = vld [vmem:[%s1 + $0x338] sm:$0xf]
  %v427 = vld [vmem:[%s1 + $0x33c] sm:$0xf]
  %v428 = vld [vmem:[%s1 + $0x340] sm:$0xf]
  %v429 = vld [vmem:[%s1 + $0x344] sm:$0xf]
  %v430 = vld [vmem:[%s1 + $0x348] sm:$0xf]
  %v431 = vld [vmem:[%s1 + $0x34c] sm:$0xf]
  %v432 = vld [vmem:[%s1 + $0x350] sm:$0xf]
  %v433 = vld [vmem:[%s1 + $0x354] sm:$0xf]
  %v434 = vld [vmem:[%s1 + $0x358] sm:$0xf]
  %v435 = vld [vmem:[%s1 + $0x35c] sm:$0xf]
  %v436 = vld [vmem:[%s1 + $0x360] sm:$0xf]
  %v437 = vld [vmem:[%s1 + $0x364] sm:$0xf]
  %v438 = vld [vmem:[%s1 + $0x368] sm:$0xf]
  %v439 = vld [vmem:[%s1 + $0x36c] sm:$0xf]
  %v440 = vld [vmem:[%s1 + $0x370] sm:$0xf]
  %v441 = vld [vmem:[%s1 + $0x374] sm:$0xf]
  %v442 = vld [vmem:[%s1 + $0x378] sm:$0xf]
  %v443 = vld [vmem:[%s1 + $0x37c] sm:$0xf]
  %v444 = vld [vmem:[%s1 + $0x380] sm:$0xf]
  %v445 = vld [vmem:[%s1 + $0x384] sm:$0xf]
  %v446 = vld [vmem:[%s1 + $0x388] sm:$0xf]
  %v447 = vld [vmem:[%s1 + $0x38c] sm:$0xf]
  %v448 = vld [vmem:[%s1 + $0x390] sm:$0xf]
  %v449 = vld [vmem:[%s1 + $0x394] sm:$0xf]
  %v450 = vld [vmem:[%s1 + $0x398] sm:$0xf]
  %v451 = vld [vmem:[%s1 + $0x39c] sm:$0xf]
  %v452 = vld [vmem:[%s1 + $0x3a0] sm:$0xf]
  %v453 = vld [vmem:[%s1 + $0x3a4] sm:$0xf]
  %v454 = vld [vmem:[%s1 + $0x3a8] sm:$0xf]
  %v455 = vld [vmem:[%s1 + $0x3ac] sm:$0xf]
  %v456 = vld [vmem:[%s1 + $0x3b0] sm:$0xf]
  %v457 = vld [vmem:[%s1 + $0x3b4] sm:$0xf]
  %v458 = vld [vmem:[%s1 + $0x3b8] sm:$0xf]
  %v459 = vld [vmem:[%s1 + $0x3bc] sm:$0xf]
  %v460 = vld [vmem:[%s1 + $0x3c0] sm:$0xf]
  %v461 = vld [vmem:[%s1 + $0x3c4] sm:$0xf]
  %v462 = vld [vmem:[%s1 + $0x3c8] sm:$0xf]
  %v463 = vld [vmem:[%s1 + $0x3cc] sm:$0xf]
  %v464 = vld [vmem:[%s1 + $0x3d0] sm:$0xf]
  %v465 = vld [vmem:[%s1 + $0x3d4] sm:$0xf]
  %v466 = vld [vmem:[%s1 + $0x3d8] sm:$0xf]
  %v467 = vld [vmem:[%s1 + $0x3dc] sm:$0xf]
  %v468 = vld [vmem:[%s1 + $0x3e0] sm:$0xf]
  %v469 = vld [vmem:[%s1 + $0x3e4] sm:$0xf]
  %v470 = vld [vmem:[%s1 + $0x3e8] sm:$0xf]
  %v471 = vld [vmem:[%s1 + $0x3ec] sm:$0xf]
  %v472 = vld [vmem:[%s1 + $0x3f0] sm:$0xf]
  %v473 = vld [vmem:[%s1 + $0x3f4] sm:$0xf]
  %v474 = vld [vmem:[%s1 + $0x3f8] sm:$0xf]
  %v475 = vld [vmem:[%s1 + $0x3fc] sm:$0xf]
  %v476 = vld [vmem:[%s1 + $0x400] sm:$0xf]
  %v477 = vld [vmem:[%s1 + $0x404] sm:$0xf]
  %v478 = vld [vmem:[%s1 + $0x408] sm:$0xf]
  %v479 = vld [vmem:[%s1 + $0x40c] sm:$0xf]
  %v480 = vld [vmem:[%s1 + $0x410] sm:$0xf]
  %v481 = vld [vmem:[%s1 + $0x414] sm:$0xf]
  %v482 = vld [vmem:[%s1 + $0x418] sm:$0xf]
  %v483 = vld [vmem:[%s1 + $0x41c] sm:$0xf]
  %v484 = vld [vmem:[%s1 + $0x420] sm:$0xf]
  %v485 = vld [vmem:[%s1 + $0x424] sm:$0xf]
  %v486 = vld [vmem:[%s1 + $0x428] sm:$0xf]
  %v487 = vld [vmem:[%s1 + $0x42c] sm:$0xf]
  %v488 = vld [vmem:[%s1 + $0x430] sm:$0xf]
  %v489 = vld [vmem:[%s1 + $0x434] sm:$0xf]
  %v490 = vld [vmem:[%s1 + $0x438] sm:$0xf]
  %v491 = vld [vmem:[%s1 + $0x43c] sm:$0xf]
  %v492 = vld [vmem:[%s1 + $0x440] sm:$0xf]
  %v493 = vld [vmem:[%s1 + $0x444] sm:$0xf]
  %v494 = vld [vmem:[%s1 + $0x448] sm:$0xf]
  %v495 = vld [vmem:[%s1 + $0x44c] sm:$0xf]
  %v496 = vld [vmem:[%s1 + $0x450] sm:$0xf]
  %v497 = vld [vmem:[%s1 + $0x454] sm:$0xf]
  %v498 = vld [vmem:[%s1 + $0x458] sm:$0xf]
  %v499 = vld [vmem:[%s1 + $0x45c] sm:$0xf]
  %v500 = vld [vmem:[%s1 + $0x460] sm:$0xf]
  %v501 = vld [vmem:[%s1 + $0x464] sm:$0xf]
  %v502 = vld [vmem:[%s1 + $0x468] sm:$0xf]
  %v503 = vld [vmem:[%s1 + $0x46c] sm:$0xf]
  %v504 = vld [vmem:[%s1 + $0x470] sm:$0xf]
  %v505 = vld [vmem:[%s1 + $0x474] sm:$0xf]
  %v506 = vld [vmem:[%s1 + $0x478] sm:$0xf]
  %v507 = vld [vmem:[%s1 + $0x47c] sm:$0xf]
  %v508 = vld [vmem:[%s1 + $0x480] sm:$0xf]
  %v509 = vld [vmem:[%s1 + $0x484] sm:$0xf]
  %v510 = vld [vmem:[%s1 + $0x488] sm:$0xf]
  %v511 = vld [vmem:[%s1 + $0x48c] sm:$0xf]
  %v512 = vld [vmem:[%s1 + $0x490] sm:$0xf]
  %v513 = vld [vmem:[%s1 + $0x494] sm:$0xf]
  %v514 = vld [vmem:[%s1 + $0x498] sm:$0xf]
  %v515 = vld [vmem:[%s1 + $0x49c] sm:$0xf]
  %v516 = vld [vmem:[%s1 + $0x4a0] sm:$0xf]
  %v517 = vld [vmem:[%s1 + $0x4a4] sm:$0xf]
  %v518 = vld [vmem:[%s1 + $0x4a8] sm:$0xf]
  %v519 = vld [vmem:[%s1 + $0x4ac] sm:$0xf]
  %v520 = vld [vmem:[%s1 + $0x4b0] sm:$0xf]
  %v521 = vld [vmem:[%s1 + $0x4b4] sm:$0xf]
  %v522 = vld [vmem:[%s1 + $0x4b8] sm:$0xf]
  %v523 = vld [vmem:[%s1 + $0x4bc] sm:$0xf]
  %v524 = vld [vmem:[%s1 + $0x4c0] sm:$0xf]
  %v525 = vld [vmem:[%s1 + $0x4c4] sm:$0xf]
  %v526 = vld [vmem:[%s1 + $0x4c8] sm:$0xf]
  %v527 = vld [vmem:[%s1 + $0x4cc] sm:$0xf]
  %v528 = vld [vmem:[%s1 + $0x4d0] sm:$0xf]
  %v529 = vld [vmem:[%s1 + $0x4d4] sm:$0xf]
  %v530 = vld [vmem:[%s1 + $0x4d8] sm:$0xf]
  %v531 = vld [vmem:[%s1 + $0x4dc] sm:$0xf]
  %v532 = vld [vmem:[%s1 + $0x4e0] sm:$0xf]
  %v533 = vld [vmem:[%s1 + $0x4e4] sm:$0xf]
  %v534 = vld [vmem:[%s1 + $0x4e8] sm:$0xf]
  %v535 = vld [vmem:[%s1 + $0x4ec] sm:$0xf]
  %v536 = vld [vmem:[%s1 + $0x4f0] sm:$0xf]
  %v537 = vld [vmem:[%s1 + $0x4f4] sm:$0xf]
  %v538 = vld [vmem:[%s1 + $0x4f8] sm:$0xf]
  %v539 = vld [vmem:[%s1 + $0x4fc] sm:$0xf]
  %v540 = vld [vmem:[%s1 + $0x500] sm:$0xf]
  %v541 = vld [vmem:[%s1 + $0x504] sm:$0xf]
  %v542 = vld [vmem:[%s1 + $0x508] sm:$0xf]
  %v543 = vld [vmem:[%s1 + $0x50c] sm:$0xf]
  %v544 = vld [vmem:[%s1 + $0x510] sm:$0xf]
  %v545 = vld [vmem:[%s1 + $0x514] sm:$0xf]
  %v546 = vld [vmem:[%s1 + $0x518] sm:$0xf]
  %v547 = vld [vmem:[%s1 + $0x51c] sm:$0xf]
  %v548 = vld [vmem:[%s1 + $0x520] sm:$0xf]
  %v549 = vld [vmem:[%s1 + $0x524] sm:$0xf]
  %v550 = vld [vmem:[%s1 + $0x528] sm:$0xf]
  %v551 = vld [vmem:[%s1 + $0x52c] sm:$0xf]
  %v552 = vld [vmem:[%s1 + $0x530] sm:$0xf]
  %v553 = vld [vmem:[%s1 + $0x534] sm:$0xf]
  %v554 = vld [vmem:[%s1 + $0x538] sm:$0xf]
  %v555 = vld [vmem:[%s1 + $0x53c] sm:$0xf]
  %v556 = vld [vmem:[%s1 + $0x540] sm:$0xf]
  %v557 = vld [vmem:[%s1 + $0x544] sm:$0xf]
  %v558 = vld [vmem:[%s1 + $0x548] sm:$0xf]
  %v559 = vld [vmem:[%s1 + $0x54c] sm:$0xf]
  %v560 = vld [vmem:[%s1 + $0x550] sm:$0xf]
  %v561 = vld [vmem:[%s1 + $0x554] sm:$0xf]
  %v562 = vld [vmem:[%s1 + $0x558] sm:$0xf]
  %v563 = vld [vmem:[%s1 + $0x55c] sm:$0xf]
  %v564 = vld [vmem:[%s1 + $0x560] sm:$0xf]
  %v565 = vld [vmem:[%s1 + $0x564] sm:$0xf]
  %v566 = vld [vmem:[%s1 + $0x568] sm:$0xf]
  %v567 = vld [vmem:[%s1 + $0x56c] sm:$0xf]
  %v568 = vld [vmem:[%s1 + $0x570] sm:$0xf]
  %v569 = vld [vmem:[%s1 + $0x574] sm:$0xf]
  %v570 = vld [vmem:[%s1 + $0x578] sm:$0xf]
  %v571 = vld [vmem:[%s1 + $0x57c] sm:$0xf]
  %v572 = vld [vmem:[%s1 + $0x580] sm:$0xf]
  %v573 = vld [vmem:[%s1 + $0x584] sm:$0xf]
  %v574 = vld [vmem:[%s1 + $0x588] sm:$0xf]
  %v575 = vld [vmem:[%s1 + $0x58c] sm:$0xf]
  %v576 = vld [vmem:[%s1 + $0x590] sm:$0xf]
  %v577 = vld [vmem:[%s1 + $0x594] sm:$0xf]
  %v578 = vld [vmem:[%s1 + $0x598] sm:$0xf]
  %v579 = vld [vmem:[%s1 + $0x59c] sm:$0xf]
  %v580 = vld [vmem:[%s1 + $0x5a0] sm:$0xf]
  %v581 = vld [vmem:[%s1 + $0x5a4] sm:$0xf]
  %v582 = vld [vmem:[%s1 + $0x5a8] sm:$0xf]
  %v583 = vld [vmem:[%s1 + $0x5ac] sm:$0xf]
  %v584 = vld [vmem:[%s1 + $0x5b0] sm:$0xf]
  %v585 = vld [vmem:[%s1 + $0x5b4] sm:$0xf]
  %v586 = vld [vmem:[%s1 + $0x5b8] sm:$0xf]
  %v587 = vld [vmem:[%s1 + $0x5bc] sm:$0xf]
  %v588 = vld [vmem:[%s1 + $0x5c0] sm:$0xf]
  %v589 = vld [vmem:[%s1 + $0x5c4] sm:$0xf]
  %v590 = vld [vmem:[%s1 + $0x5c8] sm:$0xf]
  %v591 = vld [vmem:[%s1 + $0x5cc] sm:$0xf]
  %v592 = vld [vmem:[%s1 + $0x5d0] sm:$0xf]
  %v593 = vld [vmem:[%s1 + $0x5d4] sm:$0xf]
  %v594 = vld [vmem:[%s1 + $0x5d8] sm:$0xf]
  %v595 = vld [vmem:[%s1 + $0x5dc] sm:$0xf]
  %v596 = vld [vmem:[%s1 + $0x5e0] sm:$0xf]
  %v597 = vld [vmem:[%s1 + $0x5e4] sm:$0xf]
  %v598 = vld [vmem:[%s1 + $0x5e8] sm:$0xf]
  %v599 = vld [vmem:[%s1 + $0x5ec] sm:$0xf]
  %v600 = vld [vmem:[%s1 + $0x5f0] sm:$0xf]
  %v601 = vld [vmem:[%s1 + $0x5f4] sm:$0xf]
  %v602 = vld [vmem:[%s1 + $0x5f8] sm:$0xf]
  %v603 = vld [vmem:[%s1 + $0x5fc] sm:$0xf]
  %v604 = vld [vmem:[%s1 + $0x600] sm:$0xf]
  %v605 = vld [vmem:[%s1 + $0x604] sm:$0xf]
  %v606 = vld [vmem:[%s1 + $0x608] sm:$0xf]
  %v607 = vld [vmem:[%s1 + $0x60c] sm:$0xf]
  %v608 = vld [vmem:[%s1 + $0x610] sm:$0xf]
  %v609 = vld [vmem:[%s1 + $0x614] sm:$0xf]
  %v610 = vld [vmem:[%s1 + $0x618] sm:$0xf]
  %v611 = vld [vmem:[%s1 + $0x61c] sm:$0xf]
  %v612 = vld [vmem:[%s1 + $0x620] sm:$0xf]
  %v613 = vld [vmem:[%s1 + $0x624] sm:$0xf]
  %v614 = vld [vmem:[%s1 + $0x628] sm:$0xf]
  %v615 = vld [vmem:[%s1 + $0x62c] sm:$0xf]
  %v616 = vld [vmem:[%s1 + $0x630] sm:$0xf]
  %v617 = vld [vmem:[%s1 + $0x634] sm:$0xf]
  %v618 = vld [vmem:[%s1 + $0x638] sm:$0xf]
  %v619 = vld [vmem:[%s1 + $0x63c] sm:$0xf]
  %v620 = vld [vmem:[%s1 + $0x640] sm:$0xf]
  %v621 = vld [vmem:[%s1 + $0x644] sm:$0xf]
  %v622 = vld [vmem:[%s1 + $0x648] sm:$0xf]
  %v623 = vld [vmem:[%s1 + $0x64c] sm:$0xf]
  %v624 = vld [vmem:[%s1 + $0x650] sm:$0xf]
  %v625 = vld [vmem:[%s1 + $0x654] sm:$0xf]
  %v626 = vld [vmem:[%s1 + $0x658] sm:$0xf]
  %v627 = vld [vmem:[%s1 + $0x65c] sm:$0xf]
  %v628 = vld [vmem:[%s1 + $0x660] sm:$0xf]
  %v629 = vld [vmem:[%s1 + $0x664] sm:$0xf]
  %v630 = vld [vmem:[%s1 + $0x668] sm:$0xf]
  %v631 = vld [vmem:[%s1 + $0x66c] sm:$0xf]
  %v632 = vld [vmem:[%s1 + $0x670] sm:$0xf]
  %v633 = vld [vmem:[%s1 + $0x674] sm:$0xf]
  %v634 = vld [vmem:[%s1 + $0x678] sm:$0xf]
  %v635 = vld [vmem:[%s1 + $0x67c] sm:$0xf]
  %v636 = vld [vmem:[%s1 + $0x680] sm:$0xf]
  %v637 = vld [vmem:[%s1 + $0x684] sm:$0xf]
  %v638 = vld [vmem:[%s1 + $0x688] sm:$0xf]
  %v639 = vld [vmem:[%s1 + $0x68c] sm:$0xf]
  %v640 = vld [vmem:[%s1 + $0x690] sm:$0xf]
  %v641 = vld [vmem:[%s1 + $0x694] sm:$0xf]
  %v642 = vld [vmem:[%s1 + $0x698] sm:$0xf]
  %v643 = vld [vmem:[%s1 + $0x69c] sm:$0xf]
  %v644 = vld [vmem:[%s1 + $0x6a0] sm:$0xf]
  %v645 = vld [vmem:[%s1 + $0x6a4] sm:$0xf]
  %v646 = vld [vmem:[%s1 + $0x6a8] sm:$0xf]
  %v647 = vld [vmem:[%s1 + $0x6ac] sm:$0xf]
  %v648 = vld [vmem:[%s1 + $0x6b0] sm:$0xf]
  %v649 = vld [vmem:[%s1 + $0x6b4] sm:$0xf]
  %v650 = vld [vmem:[%s1 + $0x6b8] sm:$0xf]
  %v651 = vld [vmem:[%s1 + $0x6bc] sm:$0xf]
  %v652 = vld [vmem:[%s1 + $0x6c0] sm:$0xf]
  %v653 = vld [vmem:[%s1 + $0x6c4] sm:$0xf]
  %v654 = vld [vmem:[%s1 + $0x6c8] sm:$0xf]
  %v655 = vld [vmem:[%s1 + $0x6cc] sm:$0xf]
  %v656 = vld [vmem:[%s1 + $0x6d0] sm:$0xf]
  %v657 = vld [vmem:[%s1 + $0x6d4] sm:$0xf]
  %v658 = vld [vmem:[%s1 + $0x6d8] sm:$0xf]
  %v659 = vld [vmem:[%s1 + $0x6dc] sm:$0xf]
  %v660 = vld [vmem:[%s1 + $0x6e0] sm:$0xf]
  %v661 = vld [vmem:[%s1 + $0x6e4] sm:$0xf]
  %v662 = vld [vmem:[%s1 + $0x6e8] sm:$0xf]
  %v663 = vld [vmem:[%s1 + $0x6ec] sm:$0xf]
  %v664 = vld [vmem:[%s1 + $0x6f0] sm:$0xf]
  %v665 = vld [vmem:[%s1 + $0x6f4] sm:$0xf]
  %v666 = vld [vmem:[%s1 + $0x6f8] sm:$0xf]
  %v667 = vld [vmem:[%s1 + $0x6fc] sm:$0xf]
  %v668 = vld [vmem:[%s1 + $0x700] sm:$0xf]
  %v669 = vld [vmem:[%s1 + $0x704] sm:$0xf]
  %v670 = vld [vmem:[%s1 + $0x708] sm:$0xf]
  %v671 = vld [vmem:[%s1 + $0x70c] sm:$0xf]
  %v672 = vld [vmem:[%s1 + $0x710] sm:$0xf]
  %v673 = vld [vmem:[%s1 + $0x714] sm:$0xf]
  %v674 = vld [vmem:[%s1 + $0x718] sm:$0xf]
  %v675 = vld [vmem:[%s1 + $0x71c] sm:$0xf]
  %v676 = vld [vmem:[%s1 + $0x720] sm:$0xf]
  %v677 = vld [vmem:[%s1 + $0x724] sm:$0xf]
  %v678 = vld [vmem:[%s1 + $0x728] sm:$0xf]
  %v679 = vld [vmem:[%s1 + $0x72c] sm:$0xf]
  %v680 = vld [vmem:[%s1 + $0x730] sm:$0xf]
  %v681 = vld [vmem:[%s1 + $0x734] sm:$0xf]
  %v682 = vld [vmem:[%s1 + $0x738] sm:$0xf]
  %v683 = vld [vmem:[%s1 + $0x73c] sm:$0xf]
  %v684 = vld [vmem:[%s1 + $0x740] sm:$0xf]
  %v685 = vld [vmem:[%s1 + $0x744] sm:$0xf]
  %v686 = vld [vmem:[%s1 + $0x748] sm:$0xf]
  %v687 = vld [vmem:[%s1 + $0x74c] sm:$0xf]
  %v688 = vld [vmem:[%s1 + $0x750] sm:$0xf]
  %v689 = vld [vmem:[%s1 + $0x754] sm:$0xf]
  %v690 = vld [vmem:[%s1 + $0x758] sm:$0xf]
  %v691 = vld [vmem:[%s1 + $0x75c] sm:$0xf]
  %v692 = vld [vmem:[%s1 + $0x760] sm:$0xf]
  %v693 = vld [vmem:[%s1 + $0x764] sm:$0xf]
  %v694 = vld [vmem:[%s1 + $0x768] sm:$0xf]
  %v695 = vld [vmem:[%s1 + $0x76c] sm:$0xf]
  %v696 = vld [vmem:[%s1 + $0x770] sm:$0xf]
  %v697 = vld [vmem:[%s1 + $0x774] sm:$0xf]
  %v698 = vld [vmem:[%s1 + $0x778] sm:$0xf]
  %v699 = vld [vmem:[%s1 + $0x77c] sm:$0xf]
  %v700 = vld [vmem:[%s1 + $0x780] sm:$0xf]
  %v701 = vld [vmem:[%s1 + $0x784] sm:$0xf]
  %v702 = vld [vmem:[%s1 + $0x788] sm:$0xf]
  %v703 = vld [vmem:[%s1 + $0x78c] sm:$0xf]
  %v704 = vld [vmem:[%s1 + $0x790] sm:$0xf]
  %v705 = vld [vmem:[%s1 + $0x794] sm:$0xf]
  %v706 = vld [vmem:[%s1 + $0x798] sm:$0xf]
  %v707 = vld [vmem:[%s1 + $0x79c] sm:$0xf]
  %v708 = vld [vmem:[%s1 + $0x7a0] sm:$0xf]
  %v709 = vld [vmem:[%s1 + $0x7a4] sm:$0xf]
  %v710 = vld [vmem:[%s1 + $0x7a8] sm:$0xf]
  %v711 = vld [vmem:[%s1 + $0x7ac] sm:$0xf]
  %v712 = vld [vmem:[%s1 + $0x7b0] sm:$0xf]
  %v713 = vld [vmem:[%s1 + $0x7b4] sm:$0xf]
  %v714 = vld [vmem:[%s1 + $0x7b8] sm:$0xf]
  %v715 = vld [vmem:[%s1 + $0x7bc] sm:$0xf]
  %v716 = vld [vmem:[%s1 + $0x7c0] sm:$0xf]
  %v717 = vld [vmem:[%s1 + $0x7c4] sm:$0xf]
  %v718 = vld [vmem:[%s1 + $0x7c8] sm:$0xf]
  %v719 = vld [vmem:[%s1 + $0x7cc] sm:$0xf]
  %v720 = vld [vmem:[%s1 + $0x7d0] sm:$0xf]
  %v721 = vld [vmem:[%s1 + $0x7d4] sm:$0xf]
  %v722 = vld [vmem:[%s1 + $0x7d8] sm:$0xf]
  %v723 = vld [vmem:[%s1 + $0x7dc] sm:$0xf]
  %v724 = vld [vmem:[%s1 + $0x7e0] sm:$0xf]
  %v725 = vld [vmem:[%s1 + $0x7e4] sm:$0xf]
  %v726 = vld [vmem:[%s1 + $0x7e8] sm:$0xf]
  %v727 = vld [vmem:[%s1 + $0x7ec] sm:$0xf]
  %v728 = vld [vmem:[%s1 + $0x7f0] sm:$0xf]
  %v729 = vld [vmem:[%s1 + $0x7f4] sm:$0xf]
  %v730 = vld [vmem:[%s1 + $0x7f8] sm:$0xf]
  %v731 = vld [vmem:[%s1 + $0x7fc] sm:$0xf]
  %v732 = vld [vmem:[%s2] sm:$0x1]
  %v734 = vlaneseq
  %v735 = vshrl.u32 %v734, 7
  %v736 = vsub.s32 0, %v735
  %v737 = vrot.slane %v732, %v736
  %v1251 = vunpack.c.l.b16 %v220
  %v1252 = vunpack.c.l.b16 %v221
  %v1253 = vunpack.c.l.b16 %v222
  %v1254 = vunpack.c.l.b16 %v223
  %v1255 = vunpack.c.l.b16 %v224
  %v1256 = vunpack.c.l.b16 %v225
  %v1257 = vunpack.c.l.b16 %v226
  %v1258 = vunpack.c.l.b16 %v227
  %v1259 = vunpack.c.l.b16 %v228
  %v1260 = vunpack.c.l.b16 %v229
  %v1261 = vunpack.c.l.b16 %v230
  %v1262 = vunpack.c.l.b16 %v231
  %v1263 = vunpack.c.l.b16 %v232
  %v1264 = vunpack.c.l.b16 %v233
  %v1265 = vunpack.c.l.b16 %v234
  %v1266 = vunpack.c.l.b16 %v235
  %v1267 = vunpack.c.l.b16 %v236
  %v1268 = vunpack.c.l.b16 %v237
  %v1269 = vunpack.c.l.b16 %v238
  %v1270 = vunpack.c.l.b16 %v239
  %v1271 = vunpack.c.l.b16 %v240
  %v1272 = vunpack.c.l.b16 %v241
  %v1273 = vunpack.c.l.b16 %v242
  %v1274 = vunpack.c.l.b16 %v243
  %v1275 = vunpack.c.l.b16 %v244
  %v1276 = vunpack.c.l.b16 %v245
  %v1277 = vunpack.c.l.b16 %v246
  %v1278 = vunpack.c.l.b16 %v247
  %v1279 = vunpack.c.l.b16 %v248
  %v1280 = vunpack.c.l.b16 %v249
  %v1281 = vunpack.c.l.b16 %v250
  %v1282 = vunpack.c.l.b16 %v251
  %v1283 = vunpack.c.l.b16 %v252
  %v1284 = vunpack.c.l.b16 %v253
  %v1285 = vunpack.c.l.b16 %v254
  %v1286 = vunpack.c.l.b16 %v255
  %v1287 = vunpack.c.l.b16 %v256
  %v1288 = vunpack.c.l.b16 %v257
  %v1289 = vunpack.c.l.b16 %v258
  %v1290 = vunpack.c.l.b16 %v259
  %v1291 = vunpack.c.l.b16 %v260
  %v1292 = vunpack.c.l.b16 %v261
  %v1293 = vunpack.c.l.b16 %v262
  %v1294 = vunpack.c.l.b16 %v263
  %v1295 = vunpack.c.l.b16 %v264
  %v1296 = vunpack.c.l.b16 %v265
  %v1297 = vunpack.c.l.b16 %v266
  %v1298 = vunpack.c.l.b16 %v267
  %v1299 = vunpack.c.l.b16 %v268
  %v1300 = vunpack.c.l.b16 %v269
  %v1301 = vunpack.c.l.b16 %v270
  %v1302 = vunpack.c.l.b16 %v271
  %v1303 = vunpack.c.l.b16 %v272
  %v1304 = vunpack.c.l.b16 %v273
  %v1305 = vunpack.c.l.b16 %v274
  %v1306 = vunpack.c.l.b16 %v275
  %v1307 = vunpack.c.l.b16 %v276
  %v1308 = vunpack.c.l.b16 %v277
  %v1309 = vunpack.c.l.b16 %v278
  %v1310 = vunpack.c.l.b16 %v279
  %v1311 = vunpack.c.l.b16 %v280
  %v1312 = vunpack.c.l.b16 %v281
  %v1313 = vunpack.c.l.b16 %v282
  %v1314 = vunpack.c.l.b16 %v283
  %v1315 = vunpack.c.l.b16 %v284
  %v1316 = vunpack.c.l.b16 %v285
  %v1317 = vunpack.c.l.b16 %v286
  %v1318 = vunpack.c.l.b16 %v287
  %v1319 = vunpack.c.l.b16 %v288
  %v1320 = vunpack.c.l.b16 %v289
  %v1321 = vunpack.c.l.b16 %v290
  %v1322 = vunpack.c.l.b16 %v291
  %v1323 = vunpack.c.l.b16 %v292
  %v1324 = vunpack.c.l.b16 %v293
  %v1325 = vunpack.c.l.b16 %v294
  %v1326 = vunpack.c.l.b16 %v295
  %v1327 = vunpack.c.l.b16 %v296
  %v1328 = vunpack.c.l.b16 %v297
  %v1329 = vunpack.c.l.b16 %v298
  %v1330 = vunpack.c.l.b16 %v299
  %v1331 = vunpack.c.l.b16 %v300
  %v1332 = vunpack.c.l.b16 %v301
  %v1333 = vunpack.c.l.b16 %v302
  %v1334 = vunpack.c.l.b16 %v303
  %v1335 = vunpack.c.l.b16 %v304
  %v1336 = vunpack.c.l.b16 %v305
  %v1337 = vunpack.c.l.b16 %v306
  %v1338 = vunpack.c.l.b16 %v307
  %v1339 = vunpack.c.l.b16 %v308
  %v1340 = vunpack.c.l.b16 %v309
  %v1341 = vunpack.c.l.b16 %v310
  %v1342 = vunpack.c.l.b16 %v311
  %v1343 = vunpack.c.l.b16 %v312
  %v1344 = vunpack.c.l.b16 %v313
  %v1345 = vunpack.c.l.b16 %v314
  %v1346 = vunpack.c.l.b16 %v315
  %v1347 = vunpack.c.l.b16 %v316
  %v1348 = vunpack.c.l.b16 %v317
  %v1349 = vunpack.c.l.b16 %v318
  %v1350 = vunpack.c.l.b16 %v319
  %v1351 = vunpack.c.l.b16 %v320
  %v1352 = vunpack.c.l.b16 %v321
  %v1353 = vunpack.c.l.b16 %v322
  %v1354 = vunpack.c.l.b16 %v323
  %v1355 = vunpack.c.l.b16 %v324
  %v1356 = vunpack.c.l.b16 %v325
  %v1357 = vunpack.c.l.b16 %v326
  %v1358 = vunpack.c.l.b16 %v327
  %v1359 = vunpack.c.l.b16 %v328
  %v1360 = vunpack.c.l.b16 %v329
  %v1361 = vunpack.c.l.b16 %v330
  %v1362 = vunpack.c.l.b16 %v331
  %v1363 = vunpack.c.l.b16 %v332
  %v1364 = vunpack.c.l.b16 %v333
  %v1365 = vunpack.c.l.b16 %v334
  %v1366 = vunpack.c.l.b16 %v335
  %v1367 = vunpack.c.l.b16 %v336
  %v1368 = vunpack.c.l.b16 %v337
  %v1369 = vunpack.c.l.b16 %v338
  %v1370 = vunpack.c.l.b16 %v339
  %v1371 = vunpack.c.l.b16 %v340
  %v1372 = vunpack.c.l.b16 %v341
  %v1373 = vunpack.c.l.b16 %v342
  %v1374 = vunpack.c.l.b16 %v343
  %v1375 = vunpack.c.l.b16 %v344
  %v1376 = vunpack.c.l.b16 %v345
  %v1377 = vunpack.c.l.b16 %v346
  %v1378 = vunpack.c.l.b16 %v347
  %v1379 = vunpack.c.l.b16 %v348
  %v1380 = vunpack.c.l.b16 %v349
  %v1381 = vunpack.c.l.b16 %v350
  %v1382 = vunpack.c.l.b16 %v351
  %v1383 = vunpack.c.l.b16 %v352
  %v1384 = vunpack.c.l.b16 %v353
  %v1385 = vunpack.c.l.b16 %v354
  %v1386 = vunpack.c.l.b16 %v355
  %v1387 = vunpack.c.l.b16 %v356
  %v1388 = vunpack.c.l.b16 %v357
  %v1389 = vunpack.c.l.b16 %v358
  %v1390 = vunpack.c.l.b16 %v359
  %v1391 = vunpack.c.l.b16 %v360
  %v1392 = vunpack.c.l.b16 %v361
  %v1393 = vunpack.c.l.b16 %v362
  %v1394 = vunpack.c.l.b16 %v363
  %v1395 = vunpack.c.l.b16 %v364
  %v1396 = vunpack.c.l.b16 %v365
  %v1397 = vunpack.c.l.b16 %v366
  %v1398 = vunpack.c.l.b16 %v367
  %v1399 = vunpack.c.l.b16 %v368
  %v1400 = vunpack.c.l.b16 %v369
  %v1401 = vunpack.c.l.b16 %v370
  %v1402 = vunpack.c.l.b16 %v371
  %v1403 = vunpack.c.l.b16 %v372
  %v1404 = vunpack.c.l.b16 %v373
  %v1405 = vunpack.c.l.b16 %v374
  %v1406 = vunpack.c.l.b16 %v375
  %v1407 = vunpack.c.l.b16 %v376
  %v1408 = vunpack.c.l.b16 %v377
  %v1409 = vunpack.c.l.b16 %v378
  %v1410 = vunpack.c.l.b16 %v379
  %v1411 = vunpack.c.l.b16 %v380
  %v1412 = vunpack.c.l.b16 %v381
  %v1413 = vunpack.c.l.b16 %v382
  %v1414 = vunpack.c.l.b16 %v383
  %v1415 = vunpack.c.l.b16 %v384
  %v1416 = vunpack.c.l.b16 %v385
  %v1417 = vunpack.c.l.b16 %v386
  %v1418 = vunpack.c.l.b16 %v387
  %v1419 = vunpack.c.l.b16 %v388
  %v1420 = vunpack.c.l.b16 %v389
  %v1421 = vunpack.c.l.b16 %v390
  %v1422 = vunpack.c.l.b16 %v391
  %v1423 = vunpack.c.l.b16 %v392
  %v1424 = vunpack.c.l.b16 %v393
  %v1425 = vunpack.c.l.b16 %v394
  %v1426 = vunpack.c.l.b16 %v395
  %v1427 = vunpack.c.l.b16 %v396
  %v1428 = vunpack.c.l.b16 %v397
  %v1429 = vunpack.c.l.b16 %v398
  %v1430 = vunpack.c.l.b16 %v399
  %v1431 = vunpack.c.l.b16 %v400
  %v1432 = vunpack.c.l.b16 %v401
  %v1433 = vunpack.c.l.b16 %v402
  %v1434 = vunpack.c.l.b16 %v403
  %v1435 = vunpack.c.l.b16 %v404
  %v1436 = vunpack.c.l.b16 %v405
  %v1437 = vunpack.c.l.b16 %v406
  %v1438 = vunpack.c.l.b16 %v407
  %v1439 = vunpack.c.l.b16 %v408
  %v1440 = vunpack.c.l.b16 %v409
  %v1441 = vunpack.c.l.b16 %v410
  %v1442 = vunpack.c.l.b16 %v411
  %v1443 = vunpack.c.l.b16 %v412
  %v1444 = vunpack.c.l.b16 %v413
  %v1445 = vunpack.c.l.b16 %v414
  %v1446 = vunpack.c.l.b16 %v415
  %v1447 = vunpack.c.l.b16 %v416
  %v1448 = vunpack.c.l.b16 %v417
  %v1449 = vunpack.c.l.b16 %v418
  %v1450 = vunpack.c.l.b16 %v419
  %v1451 = vunpack.c.l.b16 %v420
  %v1452 = vunpack.c.l.b16 %v421
  %v1453 = vunpack.c.l.b16 %v422
  %v1454 = vunpack.c.l.b16 %v423
  %v1455 = vunpack.c.l.b16 %v424
  %v1456 = vunpack.c.l.b16 %v425
  %v1457 = vunpack.c.l.b16 %v426
  %v1458 = vunpack.c.l.b16 %v427
  %v1459 = vunpack.c.l.b16 %v428
  %v1460 = vunpack.c.l.b16 %v429
  %v1461 = vunpack.c.l.b16 %v430
  %v1462 = vunpack.c.l.b16 %v431
  %v1463 = vunpack.c.l.b16 %v432
  %v1464 = vunpack.c.l.b16 %v433
  %v1465 = vunpack.c.l.b16 %v434
  %v1466 = vunpack.c.l.b16 %v435
  %v1467 = vunpack.c.l.b16 %v436
  %v1468 = vunpack.c.l.b16 %v437
  %v1469 = vunpack.c.l.b16 %v438
  %v1470 = vunpack.c.l.b16 %v439
  %v1471 = vunpack.c.l.b16 %v440
  %v1472 = vunpack.c.l.b16 %v441
  %v1473 = vunpack.c.l.b16 %v442
  %v1474 = vunpack.c.l.b16 %v443
  %v1475 = vunpack.c.l.b16 %v444
  %v1476 = vunpack.c.l.b16 %v445
  %v1477 = vunpack.c.l.b16 %v446
  %v1478 = vunpack.c.l.b16 %v447
  %v1479 = vunpack.c.l.b16 %v448
  %v1480 = vunpack.c.l.b16 %v449
  %v1481 = vunpack.c.l.b16 %v450
  %v1482 = vunpack.c.l.b16 %v451
  %v1483 = vunpack.c.l.b16 %v452
  %v1484 = vunpack.c.l.b16 %v453
  %v1485 = vunpack.c.l.b16 %v454
  %v1486 = vunpack.c.l.b16 %v455
  %v1487 = vunpack.c.l.b16 %v456
  %v1488 = vunpack.c.l.b16 %v457
  %v1489 = vunpack.c.l.b16 %v458
  %v1490 = vunpack.c.l.b16 %v459
  %v1491 = vunpack.c.l.b16 %v460
  %v1492 = vunpack.c.l.b16 %v461
  %v1493 = vunpack.c.l.b16 %v462
  %v1494 = vunpack.c.l.b16 %v463
  %v1495 = vunpack.c.l.b16 %v464
  %v1496 = vunpack.c.l.b16 %v465
  %v1497 = vunpack.c.l.b16 %v466
  %v1498 = vunpack.c.l.b16 %v467
  %v1499 = vunpack.c.l.b16 %v468
  %v1500 = vunpack.c.l.b16 %v469
  %v1501 = vunpack.c.l.b16 %v470
  %v1502 = vunpack.c.l.b16 %v471
  %v1503 = vunpack.c.l.b16 %v472
  %v1504 = vunpack.c.l.b16 %v473
  %v1505 = vunpack.c.l.b16 %v474
  %v1506 = vunpack.c.l.b16 %v475
  %v1507 = vunpack.c.l.b16 %v476
  %v1508 = vunpack.c.l.b16 %v477
  %v1509 = vunpack.c.l.b16 %v478
  %v1510 = vunpack.c.l.b16 %v479
  %v1511 = vunpack.c.l.b16 %v480
  %v1512 = vunpack.c.l.b16 %v481
  %v1513 = vunpack.c.l.b16 %v482
  %v1514 = vunpack.c.l.b16 %v483
  %v1515 = vunpack.c.l.b16 %v484
  %v1516 = vunpack.c.l.b16 %v485
  %v1517 = vunpack.c.l.b16 %v486
  %v1518 = vunpack.c.l.b16 %v487
  %v1519 = vunpack.c.l.b16 %v488
  %v1520 = vunpack.c.l.b16 %v489
  %v1521 = vunpack.c.l.b16 %v490
  %v1522 = vunpack.c.l.b16 %v491
  %v1523 = vunpack.c.l.b16 %v492
  %v1524 = vunpack.c.l.b16 %v493
  %v1525 = vunpack.c.l.b16 %v494
  %v1526 = vunpack.c.l.b16 %v495
  %v1527 = vunpack.c.l.b16 %v496
  %v1528 = vunpack.c.l.b16 %v497
  %v1529 = vunpack.c.l.b16 %v498
  %v1530 = vunpack.c.l.b16 %v499
  %v1531 = vunpack.c.l.b16 %v500
  %v1532 = vunpack.c.l.b16 %v501
  %v1533 = vunpack.c.l.b16 %v502
  %v1534 = vunpack.c.l.b16 %v503
  %v1535 = vunpack.c.l.b16 %v504
  %v1536 = vunpack.c.l.b16 %v505
  %v1537 = vunpack.c.l.b16 %v506
  %v1538 = vunpack.c.l.b16 %v507
  %v1539 = vunpack.c.l.b16 %v508
  %v1540 = vunpack.c.l.b16 %v509
  %v1541 = vunpack.c.l.b16 %v510
  %v1542 = vunpack.c.l.b16 %v511
  %v1543 = vunpack.c.l.b16 %v512
  %v1544 = vunpack.c.l.b16 %v513
  %v1545 = vunpack.c.l.b16 %v514
  %v1546 = vunpack.c.l.b16 %v515
  %v1547 = vunpack.c.l.b16 %v516
  %v1548 = vunpack.c.l.b16 %v517
  %v1549 = vunpack.c.l.b16 %v518
  %v1550 = vunpack.c.l.b16 %v519
  %v1551 = vunpack.c.l.b16 %v520
  %v1552 = vunpack.c.l.b16 %v521
  %v1553 = vunpack.c.l.b16 %v522
  %v1554 = vunpack.c.l.b16 %v523
  %v1555 = vunpack.c.l.b16 %v524
  %v1556 = vunpack.c.l.b16 %v525
  %v1557 = vunpack.c.l.b16 %v526
  %v1558 = vunpack.c.l.b16 %v527
  %v1559 = vunpack.c.l.b16 %v528
  %v1560 = vunpack.c.l.b16 %v529
  %v1561 = vunpack.c.l.b16 %v530
  %v1562 = vunpack.c.l.b16 %v531
  %v1563 = vunpack.c.l.b16 %v532
  %v1564 = vunpack.c.l.b16 %v533
  %v1565 = vunpack.c.l.b16 %v534
  %v1566 = vunpack.c.l.b16 %v535
  %v1567 = vunpack.c.l.b16 %v536
  %v1568 = vunpack.c.l.b16 %v537
  %v1569 = vunpack.c.l.b16 %v538
  %v1570 = vunpack.c.l.b16 %v539
  %v1571 = vunpack.c.l.b16 %v540
  %v1572 = vunpack.c.l.b16 %v541
  %v1573 = vunpack.c.l.b16 %v542
  %v1574 = vunpack.c.l.b16 %v543
  %v1575 = vunpack.c.l.b16 %v544
  %v1576 = vunpack.c.l.b16 %v545
  %v1577 = vunpack.c.l.b16 %v546
  %v1578 = vunpack.c.l.b16 %v547
  %v1579 = vunpack.c.l.b16 %v548
  %v1580 = vunpack.c.l.b16 %v549
  %v1581 = vunpack.c.l.b16 %v550
  %v1582 = vunpack.c.l.b16 %v551
  %v1583 = vunpack.c.l.b16 %v552
  %v1584 = vunpack.c.l.b16 %v553
  %v1585 = vunpack.c.l.b16 %v554
  %v1586 = vunpack.c.l.b16 %v555
  %v1587 = vunpack.c.l.b16 %v556
  %v1588 = vunpack.c.l.b16 %v557
  %v1589 = vunpack.c.l.b16 %v558
  %v1590 = vunpack.c.l.b16 %v559
  %v1591 = vunpack.c.l.b16 %v560
  %v1592 = vunpack.c.l.b16 %v561
  %v1593 = vunpack.c.l.b16 %v562
  %v1594 = vunpack.c.l.b16 %v563
  %v1595 = vunpack.c.l.b16 %v564
  %v1596 = vunpack.c.l.b16 %v565
  %v1597 = vunpack.c.l.b16 %v566
  %v1598 = vunpack.c.l.b16 %v567
  %v1599 = vunpack.c.l.b16 %v568
  %v1600 = vunpack.c.l.b16 %v569
  %v1601 = vunpack.c.l.b16 %v570
  %v1602 = vunpack.c.l.b16 %v571
  %v1603 = vunpack.c.l.b16 %v572
  %v1604 = vunpack.c.l.b16 %v573
  %v1605 = vunpack.c.l.b16 %v574
  %v1606 = vunpack.c.l.b16 %v575
  %v1607 = vunpack.c.l.b16 %v576
  %v1608 = vunpack.c.l.b16 %v577
  %v1609 = vunpack.c.l.b16 %v578
  %v1610 = vunpack.c.l.b16 %v579
  %v1611 = vunpack.c.l.b16 %v580
  %v1612 = vunpack.c.l.b16 %v581
  %v1613 = vunpack.c.l.b16 %v582
  %v1614 = vunpack.c.l.b16 %v583
  %v1615 = vunpack.c.l.b16 %v584
  %v1616 = vunpack.c.l.b16 %v585
  %v1617 = vunpack.c.l.b16 %v586
  %v1618 = vunpack.c.l.b16 %v587
  %v1619 = vunpack.c.l.b16 %v588
  %v1620 = vunpack.c.l.b16 %v589
  %v1621 = vunpack.c.l.b16 %v590
  %v1622 = vunpack.c.l.b16 %v591
  %v1623 = vunpack.c.l.b16 %v592
  %v1624 = vunpack.c.l.b16 %v593
  %v1625 = vunpack.c.l.b16 %v594
  %v1626 = vunpack.c.l.b16 %v595
  %v1627 = vunpack.c.l.b16 %v596
  %v1628 = vunpack.c.l.b16 %v597
  %v1629 = vunpack.c.l.b16 %v598
  %v1630 = vunpack.c.l.b16 %v599
  %v1631 = vunpack.c.l.b16 %v600
  %v1632 = vunpack.c.l.b16 %v601
  %v1633 = vunpack.c.l.b16 %v602
  %v1634 = vunpack.c.l.b16 %v603
  %v1635 = vunpack.c.l.b16 %v604
  %v1636 = vunpack.c.l.b16 %v605
  %v1637 = vunpack.c.l.b16 %v606
  %v1638 = vunpack.c.l.b16 %v607
  %v1639 = vunpack.c.l.b16 %v608
  %v1640 = vunpack.c.l.b16 %v609
  %v1641 = vunpack.c.l.b16 %v610
  %v1642 = vunpack.c.l.b16 %v611
  %v1643 = vunpack.c.l.b16 %v612
  %v1644 = vunpack.c.l.b16 %v613
  %v1645 = vunpack.c.l.b16 %v614
  %v1646 = vunpack.c.l.b16 %v615
  %v1647 = vunpack.c.l.b16 %v616
  %v1648 = vunpack.c.l.b16 %v617
  %v1649 = vunpack.c.l.b16 %v618
  %v1650 = vunpack.c.l.b16 %v619
  %v1651 = vunpack.c.l.b16 %v620
  %v1652 = vunpack.c.l.b16 %v621
  %v1653 = vunpack.c.l.b16 %v622
  %v1654 = vunpack.c.l.b16 %v623
  %v1655 = vunpack.c.l.b16 %v624
  %v1656 = vunpack.c.l.b16 %v625
  %v1657 = vunpack.c.l.b16 %v626
  %v1658 = vunpack.c.l.b16 %v627
  %v1659 = vunpack.c.l.b16 %v628
  %v1660 = vunpack.c.l.b16 %v629
  %v1661 = vunpack.c.l.b16 %v630
  %v1662 = vunpack.c.l.b16 %v631
  %v1663 = vunpack.c.l.b16 %v632
  %v1664 = vunpack.c.l.b16 %v633
  %v1665 = vunpack.c.l.b16 %v634
  %v1666 = vunpack.c.l.b16 %v635
  %v1667 = vunpack.c.l.b16 %v636
  %v1668 = vunpack.c.l.b16 %v637
  %v1669 = vunpack.c.l.b16 %v638
  %v1670 = vunpack.c.l.b16 %v639
  %v1671 = vunpack.c.l.b16 %v640
  %v1672 = vunpack.c.l.b16 %v641
  %v1673 = vunpack.c.l.b16 %v642
  %v1674 = vunpack.c.l.b16 %v643
  %v1675 = vunpack.c.l.b16 %v644
  %v1676 = vunpack.c.l.b16 %v645
  %v1677 = vunpack.c.l.b16 %v646
  %v1678 = vunpack.c.l.b16 %v647
  %v1679 = vunpack.c.l.b16 %v648
  %v1680 = vunpack.c.l.b16 %v649
  %v1681 = vunpack.c.l.b16 %v650
  %v1682 = vunpack.c.l.b16 %v651
  %v1683 = vunpack.c.l.b16 %v652
  %v1684 = vunpack.c.l.b16 %v653
  %v1685 = vunpack.c.l.b16 %v654
  %v1686 = vunpack.c.l.b16 %v655
  %v1687 = vunpack.c.l.b16 %v656
  %v1688 = vunpack.c.l.b16 %v657
  %v1689 = vunpack.c.l.b16 %v658
  %v1690 = vunpack.c.l.b16 %v659
  %v1691 = vunpack.c.l.b16 %v660
  %v1692 = vunpack.c.l.b16 %v661
  %v1693 = vunpack.c.l.b16 %v662
  %v1694 = vunpack.c.l.b16 %v663
  %v1695 = vunpack.c.l.b16 %v664
  %v1696 = vunpack.c.l.b16 %v665
  %v1697 = vunpack.c.l.b16 %v666
  %v1698 = vunpack.c.l.b16 %v667
  %v1699 = vunpack.c.l.b16 %v668
  %v1700 = vunpack.c.l.b16 %v669
  %v1701 = vunpack.c.l.b16 %v670
  %v1702 = vunpack.c.l.b16 %v671
  %v1703 = vunpack.c.l.b16 %v672
  %v1704 = vunpack.c.l.b16 %v673
  %v1705 = vunpack.c.l.b16 %v674
  %v1706 = vunpack.c.l.b16 %v675
  %v1707 = vunpack.c.l.b16 %v676
  %v1708 = vunpack.c.l.b16 %v677
  %v1709 = vunpack.c.l.b16 %v678
  %v1710 = vunpack.c.l.b16 %v679
  %v1711 = vunpack.c.l.b16 %v680
  %v1712 = vunpack.c.l.b16 %v681
  %v1713 = vunpack.c.l.b16 %v682
  %v1714 = vunpack.c.l.b16 %v683
  %v1715 = vunpack.c.l.b16 %v684
  %v1716 = vunpack.c.l.b16 %v685
  %v1717 = vunpack.c.l.b16 %v686
  %v1718 = vunpack.c.l.b16 %v687
  %v1719 = vunpack.c.l.b16 %v688
  %v1720 = vunpack.c.l.b16 %v689
  %v1721 = vunpack.c.l.b16 %v690
  %v1722 = vunpack.c.l.b16 %v691
  %v1723 = vunpack.c.l.b16 %v692
  %v1724 = vunpack.c.l.b16 %v693
  %v1725 = vunpack.c.l.b16 %v694
  %v1726 = vunpack.c.l.b16 %v695
  %v1727 = vunpack.c.l.b16 %v696
  %v1728 = vunpack.c.l.b16 %v697
  %v1729 = vunpack.c.l.b16 %v698
  %v1730 = vunpack.c.l.b16 %v699
  %v1731 = vunpack.c.l.b16 %v700
  %v1732 = vunpack.c.l.b16 %v701
  %v1733 = vunpack.c.l.b16 %v702
  %v1734 = vunpack.c.l.b16 %v703
  %v1735 = vunpack.c.l.b16 %v704
  %v1736 = vunpack.c.l.b16 %v705
  %v1737 = vunpack.c.l.b16 %v706
  %v1738 = vunpack.c.l.b16 %v707
  %v1739 = vunpack.c.l.b16 %v708
  %v1740 = vunpack.c.l.b16 %v709
  %v1741 = vunpack.c.l.b16 %v710
  %v1742 = vunpack.c.l.b16 %v711
  %v1743 = vunpack.c.l.b16 %v712
  %v1744 = vunpack.c.l.b16 %v713
  %v1745 = vunpack.c.l.b16 %v714
  %v1746 = vunpack.c.l.b16 %v715
  %v1747 = vunpack.c.l.b16 %v716
  %v1748 = vunpack.c.l.b16 %v717
  %v1749 = vunpack.c.l.b16 %v718
  %v1750 = vunpack.c.l.b16 %v719
  %v1751 = vunpack.c.l.b16 %v720
  %v1752 = vunpack.c.l.b16 %v721
  %v1753 = vunpack.c.l.b16 %v722
  %v1754 = vunpack.c.l.b16 %v723
  %v1755 = vunpack.c.l.b16 %v724
  %v1756 = vunpack.c.l.b16 %v725
  %v1757 = vunpack.c.l.b16 %v726
  %v1758 = vunpack.c.l.b16 %v727
  %v1759 = vunpack.c.l.b16 %v728
  %v1760 = vunpack.c.l.b16 %v729
  %v1761 = vunpack.c.l.b16 %v730
  %v1762 = vunpack.c.l.b16 %v731
  %v1763 = vpack.c.b16 %v1252, %v1251
  %v1764 = vpack.c.b16 %v1254, %v1253
  %v1765 = vpack.c.b16 %v1256, %v1255
  %v1766 = vpack.c.b16 %v1258, %v1257
  %v1767 = vpack.c.b16 %v1260, %v1259
  %v1768 = vpack.c.b16 %v1262, %v1261
  %v1769 = vpack.c.b16 %v1264, %v1263
  %v1770 = vpack.c.b16 %v1266, %v1265
  %v1771 = vpack.c.b16 %v1268, %v1267
  %v1772 = vpack.c.b16 %v1270, %v1269
  %v1773 = vpack.c.b16 %v1272, %v1271
  %v1774 = vpack.c.b16 %v1274, %v1273
  %v1775 = vpack.c.b16 %v1276, %v1275
  %v1776 = vpack.c.b16 %v1278, %v1277
  %v1777 = vpack.c.b16 %v1280, %v1279
  %v1778 = vpack.c.b16 %v1282, %v1281
  %v1779 = vpack.c.b16 %v1284, %v1283
  %v1780 = vpack.c.b16 %v1286, %v1285
  %v1781 = vpack.c.b16 %v1288, %v1287
  %v1782 = vpack.c.b16 %v1290, %v1289
  %v1783 = vpack.c.b16 %v1292, %v1291
  %v1784 = vpack.c.b16 %v1294, %v1293
  %v1785 = vpack.c.b16 %v1296, %v1295
  %v1786 = vpack.c.b16 %v1298, %v1297
  %v1787 = vpack.c.b16 %v1300, %v1299
  %v1788 = vpack.c.b16 %v1302, %v1301
  %v1789 = vpack.c.b16 %v1304, %v1303
  %v1790 = vpack.c.b16 %v1306, %v1305
  %v1791 = vpack.c.b16 %v1308, %v1307
  %v1792 = vpack.c.b16 %v1310, %v1309
  %v1793 = vpack.c.b16 %v1312, %v1311
  %v1794 = vpack.c.b16 %v1314, %v1313
  %v1795 = vpack.c.b16 %v1316, %v1315
  %v1796 = vpack.c.b16 %v1318, %v1317
  %v1797 = vpack.c.b16 %v1320, %v1319
  %v1798 = vpack.c.b16 %v1322, %v1321
  %v1799 = vpack.c.b16 %v1324, %v1323
  %v1800 = vpack.c.b16 %v1326, %v1325
  %v1801 = vpack.c.b16 %v1328, %v1327
  %v1802 = vpack.c.b16 %v1330, %v1329
  %v1803 = vpack.c.b16 %v1332, %v1331
  %v1804 = vpack.c.b16 %v1334, %v1333
  %v1805 = vpack.c.b16 %v1336, %v1335
  %v1806 = vpack.c.b16 %v1338, %v1337
  %v1807 = vpack.c.b16 %v1340, %v1339
  %v1808 = vpack.c.b16 %v1342, %v1341
  %v1809 = vpack.c.b16 %v1344, %v1343
  %v1810 = vpack.c.b16 %v1346, %v1345
  %v1811 = vpack.c.b16 %v1348, %v1347
  %v1812 = vpack.c.b16 %v1350, %v1349
  %v1813 = vpack.c.b16 %v1352, %v1351
  %v1814 = vpack.c.b16 %v1354, %v1353
  %v1815 = vpack.c.b16 %v1356, %v1355
  %v1816 = vpack.c.b16 %v1358, %v1357
  %v1817 = vpack.c.b16 %v1360, %v1359
  %v1818 = vpack.c.b16 %v1362, %v1361
  %v1819 = vpack.c.b16 %v1364, %v1363
  %v1820 = vpack.c.b16 %v1366, %v1365
  %v1821 = vpack.c.b16 %v1368, %v1367
  %v1822 = vpack.c.b16 %v1370, %v1369
  %v1823 = vpack.c.b16 %v1372, %v1371
  %v1824 = vpack.c.b16 %v1374, %v1373
  %v1825 = vpack.c.b16 %v1376, %v1375
  %v1826 = vpack.c.b16 %v1378, %v1377
  %v1827 = vpack.c.b16 %v1380, %v1379
  %v1828 = vpack.c.b16 %v1382, %v1381
  %v1829 = vpack.c.b16 %v1384, %v1383
  %v1830 = vpack.c.b16 %v1386, %v1385
  %v1831 = vpack.c.b16 %v1388, %v1387
  %v1832 = vpack.c.b16 %v1390, %v1389
  %v1833 = vpack.c.b16 %v1392, %v1391
  %v1834 = vpack.c.b16 %v1394, %v1393
  %v1835 = vpack.c.b16 %v1396, %v1395
  %v1836 = vpack.c.b16 %v1398, %v1397
  %v1837 = vpack.c.b16 %v1400, %v1399
  %v1838 = vpack.c.b16 %v1402, %v1401
  %v1839 = vpack.c.b16 %v1404, %v1403
  %v1840 = vpack.c.b16 %v1406, %v1405
  %v1841 = vpack.c.b16 %v1408, %v1407
  %v1842 = vpack.c.b16 %v1410, %v1409
  %v1843 = vpack.c.b16 %v1412, %v1411
  %v1844 = vpack.c.b16 %v1414, %v1413
  %v1845 = vpack.c.b16 %v1416, %v1415
  %v1846 = vpack.c.b16 %v1418, %v1417
  %v1847 = vpack.c.b16 %v1420, %v1419
  %v1848 = vpack.c.b16 %v1422, %v1421
  %v1849 = vpack.c.b16 %v1424, %v1423
  %v1850 = vpack.c.b16 %v1426, %v1425
  %v1851 = vpack.c.b16 %v1428, %v1427
  %v1852 = vpack.c.b16 %v1430, %v1429
  %v1853 = vpack.c.b16 %v1432, %v1431
  %v1854 = vpack.c.b16 %v1434, %v1433
  %v1855 = vpack.c.b16 %v1436, %v1435
  %v1856 = vpack.c.b16 %v1438, %v1437
  %v1857 = vpack.c.b16 %v1440, %v1439
  %v1858 = vpack.c.b16 %v1442, %v1441
  %v1859 = vpack.c.b16 %v1444, %v1443
  %v1860 = vpack.c.b16 %v1446, %v1445
  %v1861 = vpack.c.b16 %v1448, %v1447
  %v1862 = vpack.c.b16 %v1450, %v1449
  %v1863 = vpack.c.b16 %v1452, %v1451
  %v1864 = vpack.c.b16 %v1454, %v1453
  %v1865 = vpack.c.b16 %v1456, %v1455
  %v1866 = vpack.c.b16 %v1458, %v1457
  %v1867 = vpack.c.b16 %v1460, %v1459
  %v1868 = vpack.c.b16 %v1462, %v1461
  %v1869 = vpack.c.b16 %v1464, %v1463
  %v1870 = vpack.c.b16 %v1466, %v1465
  %v1871 = vpack.c.b16 %v1468, %v1467
  %v1872 = vpack.c.b16 %v1470, %v1469
  %v1873 = vpack.c.b16 %v1472, %v1471
  %v1874 = vpack.c.b16 %v1474, %v1473
  %v1875 = vpack.c.b16 %v1476, %v1475
  %v1876 = vpack.c.b16 %v1478, %v1477
  %v1877 = vpack.c.b16 %v1480, %v1479
  %v1878 = vpack.c.b16 %v1482, %v1481
  %v1879 = vpack.c.b16 %v1484, %v1483
  %v1880 = vpack.c.b16 %v1486, %v1485
  %v1881 = vpack.c.b16 %v1488, %v1487
  %v1882 = vpack.c.b16 %v1490, %v1489
  %v1883 = vpack.c.b16 %v1492, %v1491
  %v1884 = vpack.c.b16 %v1494, %v1493
  %v1885 = vpack.c.b16 %v1496, %v1495
  %v1886 = vpack.c.b16 %v1498, %v1497
  %v1887 = vpack.c.b16 %v1500, %v1499
  %v1888 = vpack.c.b16 %v1502, %v1501
  %v1889 = vpack.c.b16 %v1504, %v1503
  %v1890 = vpack.c.b16 %v1506, %v1505
  %v1891 = vpack.c.b16 %v1508, %v1507
  %v1892 = vpack.c.b16 %v1510, %v1509
  %v1893 = vpack.c.b16 %v1512, %v1511
  %v1894 = vpack.c.b16 %v1514, %v1513
  %v1895 = vpack.c.b16 %v1516, %v1515
  %v1896 = vpack.c.b16 %v1518, %v1517
  %v1897 = vpack.c.b16 %v1520, %v1519
  %v1898 = vpack.c.b16 %v1522, %v1521
  %v1899 = vpack.c.b16 %v1524, %v1523
  %v1900 = vpack.c.b16 %v1526, %v1525
  %v1901 = vpack.c.b16 %v1528, %v1527
  %v1902 = vpack.c.b16 %v1530, %v1529
  %v1903 = vpack.c.b16 %v1532, %v1531
  %v1904 = vpack.c.b16 %v1534, %v1533
  %v1905 = vpack.c.b16 %v1536, %v1535
  %v1906 = vpack.c.b16 %v1538, %v1537
  %v1907 = vpack.c.b16 %v1540, %v1539
  %v1908 = vpack.c.b16 %v1542, %v1541
  %v1909 = vpack.c.b16 %v1544, %v1543
  %v1910 = vpack.c.b16 %v1546, %v1545
  %v1911 = vpack.c.b16 %v1548, %v1547
  %v1912 = vpack.c.b16 %v1550, %v1549
  %v1913 = vpack.c.b16 %v1552, %v1551
  %v1914 = vpack.c.b16 %v1554, %v1553
  %v1915 = vpack.c.b16 %v1556, %v1555
  %v1916 = vpack.c.b16 %v1558, %v1557
  %v1917 = vpack.c.b16 %v1560, %v1559
  %v1918 = vpack.c.b16 %v1562, %v1561
  %v1919 = vpack.c.b16 %v1564, %v1563
  %v1920 = vpack.c.b16 %v1566, %v1565
  %v1921 = vpack.c.b16 %v1568, %v1567
  %v1922 = vpack.c.b16 %v1570, %v1569
  %v1923 = vpack.c.b16 %v1572, %v1571
  %v1924 = vpack.c.b16 %v1574, %v1573
  %v1925 = vpack.c.b16 %v1576, %v1575
  %v1926 = vpack.c.b16 %v1578, %v1577
  %v1927 = vpack.c.b16 %v1580, %v1579
  %v1928 = vpack.c.b16 %v1582, %v1581
  %v1929 = vpack.c.b16 %v1584, %v1583
  %v1930 = vpack.c.b16 %v1586, %v1585
  %v1931 = vpack.c.b16 %v1588, %v1587
  %v1932 = vpack.c.b16 %v1590, %v1589
  %v1933 = vpack.c.b16 %v1592, %v1591
  %v1934 = vpack.c.b16 %v1594, %v1593
  %v1935 = vpack.c.b16 %v1596, %v1595
  %v1936 = vpack.c.b16 %v1598, %v1597
  %v1937 = vpack.c.b16 %v1600, %v1599
  %v1938 = vpack.c.b16 %v1602, %v1601
  %v1939 = vpack.c.b16 %v1604, %v1603
  %v1940 = vpack.c.b16 %v1606, %v1605
  %v1941 = vpack.c.b16 %v1608, %v1607
  %v1942 = vpack.c.b16 %v1610, %v1609
  %v1943 = vpack.c.b16 %v1612, %v1611
  %v1944 = vpack.c.b16 %v1614, %v1613
  %v1945 = vpack.c.b16 %v1616, %v1615
  %v1946 = vpack.c.b16 %v1618, %v1617
  %v1947 = vpack.c.b16 %v1620, %v1619
  %v1948 = vpack.c.b16 %v1622, %v1621
  %v1949 = vpack.c.b16 %v1624, %v1623
  %v1950 = vpack.c.b16 %v1626, %v1625
  %v1951 = vpack.c.b16 %v1628, %v1627
  %v1952 = vpack.c.b16 %v1630, %v1629
  %v1953 = vpack.c.b16 %v1632, %v1631
  %v1954 = vpack.c.b16 %v1634, %v1633
  %v1955 = vpack.c.b16 %v1636, %v1635
  %v1956 = vpack.c.b16 %v1638, %v1637
  %v1957 = vpack.c.b16 %v1640, %v1639
  %v1958 = vpack.c.b16 %v1642, %v1641
  %v1959 = vpack.c.b16 %v1644, %v1643
  %v1960 = vpack.c.b16 %v1646, %v1645
  %v1961 = vpack.c.b16 %v1648, %v1647
  %v1962 = vpack.c.b16 %v1650, %v1649
  %v1963 = vpack.c.b16 %v1652, %v1651
  %v1964 = vpack.c.b16 %v1654, %v1653
  %v1965 = vpack.c.b16 %v1656, %v1655
  %v1966 = vpack.c.b16 %v1658, %v1657
  %v1967 = vpack.c.b16 %v1660, %v1659
  %v1968 = vpack.c.b16 %v1662, %v1661
  %v1969 = vpack.c.b16 %v1664, %v1663
  %v1970 = vpack.c.b16 %v1666, %v1665
  %v1971 = vpack.c.b16 %v1668, %v1667
  %v1972 = vpack.c.b16 %v1670, %v1669
  %v1973 = vpack.c.b16 %v1672, %v1671
  %v1974 = vpack.c.b16 %v1674, %v1673
  %v1975 = vpack.c.b16 %v1676, %v1675
  %v1976 = vpack.c.b16 %v1678, %v1677
  %v1977 = vpack.c.b16 %v1680, %v1679
  %v1978 = vpack.c.b16 %v1682, %v1681
  %v1979 = vpack.c.b16 %v1684, %v1683
  %v1980 = vpack.c.b16 %v1686, %v1685
  %v1981 = vpack.c.b16 %v1688, %v1687
  %v1982 = vpack.c.b16 %v1690, %v1689
  %v1983 = vpack.c.b16 %v1692, %v1691
  %v1984 = vpack.c.b16 %v1694, %v1693
  %v1985 = vpack.c.b16 %v1696, %v1695
  %v1986 = vpack.c.b16 %v1698, %v1697
  %v1987 = vpack.c.b16 %v1700, %v1699
  %v1988 = vpack.c.b16 %v1702, %v1701
  %v1989 = vpack.c.b16 %v1704, %v1703
  %v1990 = vpack.c.b16 %v1706, %v1705
  %v1991 = vpack.c.b16 %v1708, %v1707
  %v1992 = vpack.c.b16 %v1710, %v1709
  %v1993 = vpack.c.b16 %v1712, %v1711
  %v1994 = vpack.c.b16 %v1714, %v1713
  %v1995 = vpack.c.b16 %v1716, %v1715
  %v1996 = vpack.c.b16 %v1718, %v1717
  %v1997 = vpack.c.b16 %v1720, %v1719
  %v1998 = vpack.c.b16 %v1722, %v1721
  %v1999 = vpack.c.b16 %v1724, %v1723
  %v2000 = vpack.c.b16 %v1726, %v1725
  %v2001 = vpack.c.b16 %v1728, %v1727
  %v2002 = vpack.c.b16 %v1730, %v1729
  %v2003 = vpack.c.b16 %v1732, %v1731
  %v2004 = vpack.c.b16 %v1734, %v1733
  %v2005 = vpack.c.b16 %v1736, %v1735
  %v2006 = vpack.c.b16 %v1738, %v1737
  %v2007 = vpack.c.b16 %v1740, %v1739
  %v2008 = vpack.c.b16 %v1742, %v1741
  %v2009 = vpack.c.b16 %v1744, %v1743
  %v2010 = vpack.c.b16 %v1746, %v1745
  %v2011 = vpack.c.b16 %v1748, %v1747
  %v2012 = vpack.c.b16 %v1750, %v1749
  %v2013 = vpack.c.b16 %v1752, %v1751
  %v2014 = vpack.c.b16 %v1754, %v1753
  %v2015 = vpack.c.b16 %v1756, %v1755
  %v2016 = vpack.c.b16 %v1758, %v1757
  %v2017 = vpack.c.b16 %v1760, %v1759
  %v2018 = vpack.c.b16 %v1762, %v1761
  %2275 = vmatprep.subr.bf16.mxu0 0
  %2276 = vmatpush1.bf16.msra.mxu0 %v1763
  %2277 = vmatprep.subr.bf16.mxu0 0
  %2278 = vmatpush1.bf16.msra.mxu0 %v1764
  %2279 = vmatprep.subr.bf16.mxu0 0
  %2280 = vmatpush1.bf16.msra.mxu0 %v1765
  %2281 = vmatprep.subr.bf16.mxu0 0
  %2282 = vmatpush1.bf16.msra.mxu0 %v1766
  %2283 = vmatprep.subr.bf16.mxu0 0
  %2284 = vmatpush1.bf16.msra.mxu0 %v1767
  %2285 = vmatprep.subr.bf16.mxu0 0
  %2286 = vmatpush1.bf16.msra.mxu0 %v1768
  %2287 = vmatprep.subr.bf16.mxu0 0
  %2288 = vmatpush1.bf16.msra.mxu0 %v1769
  %2289 = vmatprep.subr.bf16.mxu0 0
  %2290 = vmatpush1.bf16.msra.mxu0 %v1770
  %2291 = vmatprep.subr.bf16.mxu0 0
  %2292 = vmatpush1.bf16.msra.mxu0 %v1771
  %2293 = vmatprep.subr.bf16.mxu0 0
  %2294 = vmatpush1.bf16.msra.mxu0 %v1772
  %2295 = vmatprep.subr.bf16.mxu0 0
  %2296 = vmatpush1.bf16.msra.mxu0 %v1773
  %2297 = vmatprep.subr.bf16.mxu0 0
  %2298 = vmatpush1.bf16.msra.mxu0 %v1774
  %2299 = vmatprep.subr.bf16.mxu0 0
  %2300 = vmatpush1.bf16.msra.mxu0 %v1775
  %2301 = vmatprep.subr.bf16.mxu0 0
  %2302 = vmatpush1.bf16.msra.mxu0 %v1776
  %2303 = vmatprep.subr.bf16.mxu0 0
  %2304 = vmatpush1.bf16.msra.mxu0 %v1777
  %2305 = vmatprep.subr.bf16.mxu0 0
  %2306 = vmatpush1.bf16.msra.mxu0 %v1778
  %2307 = vmatprep.mubr.bf16.mxu0 %v157
  %2308 = vmatmul.mubr.bf16.gmra.mrb[0].mxu0 %v156
  %v2309 = vpop.f32.mrb[0].mxu0
  %v2310 = vadd.f32 %v737, %v2309
  %v2311 = vpop.f32.mrb[0].mxu0
  %v2312 = vpop.f32.mrb[0].mxu0
  %v2313 = vadd.f32 %v737, %v2312
  %v2314 = vpop.f32.mrb[0].mxu0
  %2315 = vmatprep.mubr.bf16.mxu0 %v189
  %2316 = vmatmul.mubr.bf16.gmra.mrb[0].mxu0 %v188
  %v2317 = vpop.f32.mrb[0].mxu0
  %v2318 = vadd.f32 %v737, %v2317
  %v2319 = vpop.f32.mrb[0].mxu0
  %v2320 = vpop.f32.mrb[0].mxu0
  %v2321 = vadd.f32 %v737, %v2320
  %v2322 = vpop.f32.mrb[0].mxu0
  %2323 = vdwg.mxu0
  %2324 = vmatprep.subr.bf16.mxu0 0
  %2325 = vmatpush1.bf16.msra.mxu0 %v1779
  %2326 = vmatprep.subr.bf16.mxu0 0
  %2327 = vmatpush1.bf16.msra.mxu0 %v1780
  %2328 = vmatprep.subr.bf16.mxu0 0
  %2329 = vmatpush1.bf16.msra.mxu0 %v1781
  %2330 = vmatprep.subr.bf16.mxu0 0
  %2331 = vmatpush1.bf16.msra.mxu0 %v1782
  %2332 = vmatprep.subr.bf16.mxu0 0
  %2333 = vmatpush1.bf16.msra.mxu0 %v1783
  %2334 = vmatprep.subr.bf16.mxu0 0
  %2335 = vmatpush1.bf16.msra.mxu0 %v1784
  %2336 = vmatprep.subr.bf16.mxu0 0
  %2337 = vmatpush1.bf16.msra.mxu0 %v1785
  %2338 = vmatprep.subr.bf16.mxu0 0
  %2339 = vmatpush1.bf16.msra.mxu0 %v1786
  %2340 = vmatprep.subr.bf16.mxu0 0
  %2341 = vmatpush1.bf16.msra.mxu0 %v1787
  %2342 = vmatprep.subr.bf16.mxu0 0
  %2343 = vmatpush1.bf16.msra.mxu0 %v1788
  %2344 = vmatprep.subr.bf16.mxu0 0
  %2345 = vmatpush1.bf16.msra.mxu0 %v1789
  %2346 = vmatprep.subr.bf16.mxu0 0
  %2347 = vmatpush1.bf16.msra.mxu0 %v1790
  %2348 = vmatprep.subr.bf16.mxu0 0
  %2349 = vmatpush1.bf16.msra.mxu0 %v1791
  %2350 = vmatprep.subr.bf16.mxu0 0
  %2351 = vmatpush1.bf16.msra.mxu0 %v1792
  %2352 = vmatprep.subr.bf16.mxu0 0
  %2353 = vmatpush1.bf16.msra.mxu0 %v1793
  %2354 = vmatprep.subr.bf16.mxu0 0
  %2355 = vmatpush1.bf16.msra.mxu0 %v1794
  %2356 = vmatprep.mubr.bf16.mxu0 %v159
  %2357 = vmatmul.mubr.bf16.gmra.mrb[0].mxu0 %v158
  %v2358 = vpop.f32.mrb[0].mxu0
  %v2359 = vadd.f32 %v2310, %v2358
  %v2360 = vpop.f32.mrb[0].mxu0
  %v2361 = vpop.f32.mrb[0].mxu0
  %v2362 = vadd.f32 %v2313, %v2361
  %v2363 = vpop.f32.mrb[0].mxu0
  %2364 = vmatprep.mubr.bf16.mxu0 %v191
  %2365 = vmatmul.mubr.bf16.gmra.mrb[0].mxu0 %v190
  %v2366 = vpop.f32.mrb[0].mxu0
  %v2367 = vadd.f32 %v2318, %v2366
  %v2368 = vpop.f32.mrb[0].mxu0
  %v2369 = vpop.f32.mrb[0].mxu0
  %v2370 = vadd.f32 %v2321, %v2369
  %v2371 = vpop.f32.mrb[0].mxu0
  %2372 = vdwg.mxu0
  %2373 = vmatprep.subr.bf16.mxu0 0
  %2374 = vmatpush1.bf16.msra.mxu0 %v1795
  %2375 = vmatprep.subr.bf16.mxu0 0
  %2376 = vmatpush1.bf16.msra.mxu0 %v1796
  %2377 = vmatprep.subr.bf16.mxu0 0
  %2378 = vmatpush1.bf16.msra.mxu0 %v1797
  %2379 = vmatprep.subr.bf16.mxu0 0
  %2380 = vmatpush1.bf16.msra.mxu0 %v1798
  %2381 = vmatprep.subr.bf16.mxu0 0
  %2382 = vmatpush1.bf16.msra.mxu0 %v1799
  %2383 = vmatprep.subr.bf16.mxu0 0
  %2384 = vmatpush1.bf16.msra.mxu0 %v1800
  %2385 = vmatprep.subr.bf16.mxu0 0
  %2386 = vmatpush1.bf16.msra.mxu0 %v1801
  %2387 = vmatprep.subr.bf16.mxu0 0
  %2388 = vmatpush1.bf16.msra.mxu0 %v1802
  %2389 = vmatprep.subr.bf16.mxu0 0
  %2390 = vmatpush1.bf16.msra.mxu0 %v1803
  %2391 = vmatprep.subr.bf16.mxu0 0
  %2392 = vmatpush1.bf16.msra.mxu0 %v1804
  %2393 = vmatprep.subr.bf16.mxu0 0
  %2394 = vmatpush1.bf16.msra.mxu0 %v1805
  %2395 = vmatprep.subr.bf16.mxu0 0
  %2396 = vmatpush1.bf16.msra.mxu0 %v1806
  %2397 = vmatprep.subr.bf16.mxu0 0
  %2398 = vmatpush1.bf16.msra.mxu0 %v1807
  %2399 = vmatprep.subr.bf16.mxu0 0
  %2400 = vmatpush1.bf16.msra.mxu0 %v1808
  %2401 = vmatprep.subr.bf16.mxu0 0
  %2402 = vmatpush1.bf16.msra.mxu0 %v1809
  %2403 = vmatprep.subr.bf16.mxu0 0
  %2404 = vmatpush1.bf16.msra.mxu0 %v1810
  %2405 = vmatprep.mubr.bf16.mxu0 %v161
  %2406 = vmatmul.mubr.bf16.gmra.mrb[0].mxu0 %v160
  %v2407 = vpop.f32.mrb[0].mxu0
  %v2408 = vadd.f32 %v2359, %v2407
  %v2409 = vpop.f32.mrb[0].mxu0
  %v2410 = vpop.f32.mrb[0].mxu0
  %v2411 = vadd.f32 %v2362, %v2410
  %v2412 = vpop.f32.mrb[0].mxu0
  %2413 = vmatprep.mubr.bf16.mxu0 %v193
  %2414 = vmatmul.mubr.bf16.gmra.mrb[0].mxu0 %v192
  %v2415 = vpop.f32.mrb[0].mxu0
  %v2416 = vadd.f32 %v2367, %v2415
  %v2417 = vpop.f32.mrb[0].mxu0
  %v2418 = vpop.f32.mrb[0].mxu0
  %v2419 = vadd.f32 %v2370, %v2418
  %v2420 = vpop.f32.mrb[0].mxu0
  %2421 = vdwg.mxu0
  %2422 = vmatprep.subr.bf16.mxu0 0
  %2423 = vmatpush1.bf16.msra.mxu0 %v1811
  %2424 = vmatprep.subr.bf16.mxu0 0
  %2425 = vmatpush1.bf16.msra.mxu0 %v1812
  %2426 = vmatprep.subr.bf16.mxu0 0
  %2427 = vmatpush1.bf16.msra.mxu0 %v1813
  %2428 = vmatprep.subr.bf16.mxu0 0
  %2429 = vmatpush1.bf16.msra.mxu0 %v1814
  %2430 = vmatprep.subr.bf16.mxu0 0
  %2431 = vmatpush1.bf16.msra.mxu0 %v1815
  %2432 = vmatprep.subr.bf16.mxu0 0
  %2433 = vmatpush1.bf16.msra.mxu0 %v1816
  %2434 = vmatprep.subr.bf16.mxu0 0
  %2435 = vmatpush1.bf16.msra.mxu0 %v1817
  %2436 = vmatprep.subr.bf16.mxu0 0
  %2437 = vmatpush1.bf16.msra.mxu0 %v1818
  %2438 = vmatprep.subr.bf16.mxu0 0
  %2439 = vmatpush1.bf16.msra.mxu0 %v1819
  %2440 = vmatprep.subr.bf16.mxu0 0
  %2441 = vmatpush1.bf16.msra.mxu0 %v1820
  %2442 = vmatprep.subr.bf16.mxu0 0
  %2443 = vmatpush1.bf16.msra.mxu0 %v1821
  %2444 = vmatprep.subr.bf16.mxu0 0
  %2445 = vmatpush1.bf16.msra.mxu0 %v1822
  %2446 = vmatprep.subr.bf16.mxu0 0
  %2447 = vmatpush1.bf16.msra.mxu0 %v1823
  %2448 = vmatprep.subr.bf16.mxu0 0
  %2449 = vmatpush1.bf16.msra.mxu0 %v1824
  %2450 = vmatprep.subr.bf16.mxu0 0
  %2451 = vmatpush1.bf16.msra.mxu0 %v1825
  %2452 = vmatprep.subr.bf16.mxu0 0
  %2453 = vmatpush1.bf16.msra.mxu0 %v1826
  %2454 = vmatprep.mubr.bf16.mxu0 %v163
  %2455 = vmatmul.mubr.bf16.gmra.mrb[0].mxu0 %v162
  %v2456 = vpop.f32.mrb[0].mxu0
  %v2457 = vadd.f32 %v2408, %v2456
  %v2458 = vpop.f32.mrb[0].mxu0
  %v2459 = vpop.f32.mrb[0].mxu0
  %v2460 = vadd.f32 %v2411, %v2459
  %v2461 = vpop.f32.mrb[0].mxu0
  %2462 = vmatprep.mubr.bf16.mxu0 %v195
  %2463 = vmatmul.mubr.bf16.gmra.mrb[0].mxu0 %v194
  %v2464 = vpop.f32.mrb[0].mxu0
  %v2465 = vadd.f32 %v2416, %v2464
  %v2466 = vpop.f32.mrb[0].mxu0
  %v2467 = vpop.f32.mrb[0].mxu0
  %v2468 = vadd.f32 %v2419, %v2467
  %v2469 = vpop.f32.mrb[0].mxu0
  %2470 = vdwg.mxu0
  %2471 = vmatprep.subr.bf16.mxu0 0
  %2472 = vmatpush1.bf16.msra.mxu0 %v1827
  %2473 = vmatprep.subr.bf16.mxu0 0
  %2474 = vmatpush1.bf16.msra.mxu0 %v1828
  %2475 = vmatprep.subr.bf16.mxu0 0
  %2476 = vmatpush1.bf16.msra.mxu0 %v1829
  %2477 = vmatprep.subr.bf16.mxu0 0
  %2478 = vmatpush1.bf16.msra.mxu0 %v1830
  %2479 = vmatprep.subr.bf16.mxu0 0
  %2480 = vmatpush1.bf16.msra.mxu0 %v1831
  %2481 = vmatprep.subr.bf16.mxu0 0
  %2482 = vmatpush1.bf16.msra.mxu0 %v1832
  %2483 = vmatprep.subr.bf16.mxu0 0
  %2484 = vmatpush1.bf16.msra.mxu0 %v1833
  %2485 = vmatprep.subr.bf16.mxu0 0
  %2486 = vmatpush1.bf16.msra.mxu0 %v1834
  %2487 = vmatprep.subr.bf16.mxu0 0
  %2488 = vmatpush1.bf16.msra.mxu0 %v1835
  %2489 = vmatprep.subr.bf16.mxu0 0
  %2490 = vmatpush1.bf16.msra.mxu0 %v1836
  %2491 = vmatprep.subr.bf16.mxu0 0
  %2492 = vmatpush1.bf16.msra.mxu0 %v1837
  %2493 = vmatprep.subr.bf16.mxu0 0
  %2494 = vmatpush1.bf16.msra.mxu0 %v1838
  %2495 = vmatprep.subr.bf16.mxu0 0
  %2496 = vmatpush1.bf16.msra.mxu0 %v1839
  %2497 = vmatprep.subr.bf16.mxu0 0
  %2498 = vmatpush1.bf16.msra.mxu0 %v1840
  %2499 = vmatprep.subr.bf16.mxu0 0
  %2500 = vmatpush1.bf16.msra.mxu0 %v1841
  %2501 = vmatprep.subr.bf16.mxu0 0
  %2502 = vmatpush1.bf16.msra.mxu0 %v1842
  %2503 = vmatprep.mubr.bf16.mxu0 %v165
  %2504 = vmatmul.mubr.bf16.gmra.mrb[0].mxu0 %v164
  %v2505 = vpop.f32.mrb[0].mxu0
  %v2506 = vadd.f32 %v2457, %v2505
  %v2507 = vpop.f32.mrb[0].mxu0
  %v2508 = vpop.f32.mrb[0].mxu0
  %v2509 = vadd.f32 %v2460, %v2508
  %v2510 = vpop.f32.mrb[0].mxu0
  %2511 = vmatprep.mubr.bf16.mxu0 %v197
  %2512 = vmatmul.mubr.bf16.gmra.mrb[0].mxu0 %v196
  %v2513 = vpop.f32.mrb[0].mxu0
  %v2514 = vadd.f32 %v2465, %v2513
  %v2515 = vpop.f32.mrb[0].mxu0
  %v2516 = vpop.f32.mrb[0].mxu0
  %v2517 = vadd.f32 %v2468, %v2516
  %v2518 = vpop.f32.mrb[0].mxu0
  %2519 = vdwg.mxu0
  %2520 = vmatprep.subr.bf16.mxu0 0
  %2521 = vmatpush1.bf16.msra.mxu0 %v1843
  %2522 = vmatprep.subr.bf16.mxu0 0
  %2523 = vmatpush1.bf16.msra.mxu0 %v1844
  %2524 = vmatprep.subr.bf16.mxu0 0
  %2525 = vmatpush1.bf16.msra.mxu0 %v1845
  %2526 = vmatprep.subr.bf16.mxu0 0
  %2527 = vmatpush1.bf16.msra.mxu0 %v1846
  %2528 = vmatprep.subr.bf16.mxu0 0
  %2529 = vmatpush1.bf16.msra.mxu0 %v1847
  %2530 = vmatprep.subr.bf16.mxu0 0
  %2531 = vmatpush1.bf16.msra.mxu0 %v1848
  %2532 = vmatprep.subr.bf16.mxu0 0
  %2533 = vmatpush1.bf16.msra.mxu0 %v1849
  %2534 = vmatprep.subr.bf16.mxu0 0
  %2535 = vmatpush1.bf16.msra.mxu0 %v1850
  %2536 = vmatprep.subr.bf16.mxu0 0
  %2537 = vmatpush1.bf16.msra.mxu0 %v1851
  %2538 = vmatprep.subr.bf16.mxu0 0
  %2539 = vmatpush1.bf16.msra.mxu0 %v1852
  %2540 = vmatprep.subr.bf16.mxu0 0
  %2541 = vmatpush1.bf16.msra.mxu0 %v1853
  %2542 = vmatprep.subr.bf16.mxu0 0
  %2543 = vmatpush1.bf16.msra.mxu0 %v1854
  %2544 = vmatprep.subr.bf16.mxu0 0
  %2545 = vmatpush1.bf16.msra.mxu0 %v1855
  %2546 = vmatprep.subr.bf16.mxu0 0
  %2547 = vmatpush1.bf16.msra.mxu0 %v1856
  %2548 = vmatprep.subr.bf16.mxu0 0
  %2549 = vmatpush1.bf16.msra.mxu0 %v1857
  %2550 = vmatprep.subr.bf16.mxu0 0
  %2551 = vmatpush1.bf16.msra.mxu0 %v1858
  %2552 = vmatprep.mubr.bf16.mxu0 %v167
  %2553 = vmatmul.mubr.bf16.gmra.mrb[0].mxu0 %v166
  %v2554 = vpop.f32.mrb[0].mxu0
  %v2555 = vadd.f32 %v2506, %v2554
  %v2556 = vpop.f32.mrb[0].mxu0
  %v2557 = vpop.f32.mrb[0].mxu0
  %v2558 = vadd.f32 %v2509, %v2557
  %v2559 = vpop.f32.mrb[0].mxu0
  %2560 = vmatprep.mubr.bf16.mxu0 %v199
  %2561 = vmatmul.mubr.bf16.gmra.mrb[0].mxu0 %v198
  %v2562 = vpop.f32.mrb[0].mxu0
  %v2563 = vadd.f32 %v2514, %v2562
  %v2564 = vpop.f32.mrb[0].mxu0
  %v2565 = vpop.f32.mrb[0].mxu0
  %v2566 = vadd.f32 %v2517, %v2565
  %v2567 = vpop.f32.mrb[0].mxu0
  %2568 = vdwg.mxu0
  %2569 = vmatprep.subr.bf16.mxu0 0
  %2570 = vmatpush1.bf16.msra.mxu0 %v1859
  %2571 = vmatprep.subr.bf16.mxu0 0
  %2572 = vmatpush1.bf16.msra.mxu0 %v1860
  %2573 = vmatprep.subr.bf16.mxu0 0
  %2574 = vmatpush1.bf16.msra.mxu0 %v1861
  %2575 = vmatprep.subr.bf16.mxu0 0
  %2576 = vmatpush1.bf16.msra.mxu0 %v1862
  %2577 = vmatprep.subr.bf16.mxu0 0
  %2578 = vmatpush1.bf16.msra.mxu0 %v1863
  %2579 = vmatprep.subr.bf16.mxu0 0
  %2580 = vmatpush1.bf16.msra.mxu0 %v1864
  %2581 = vmatprep.subr.bf16.mxu0 0
  %2582 = vmatpush1.bf16.msra.mxu0 %v1865
  %2583 = vmatprep.subr.bf16.mxu0 0
  %2584 = vmatpush1.bf16.msra.mxu0 %v1866
  %2585 = vmatprep.subr.bf16.mxu0 0
  %2586 = vmatpush1.bf16.msra.mxu0 %v1867
  %2587 = vmatprep.subr.bf16.mxu0 0
  %2588 = vmatpush1.bf16.msra.mxu0 %v1868
  %2589 = vmatprep.subr.bf16.mxu0 0
  %2590 = vmatpush1.bf16.msra.mxu0 %v1869
  %2591 = vmatprep.subr.bf16.mxu0 0
  %2592 = vmatpush1.bf16.msra.mxu0 %v1870
  %2593 = vmatprep.subr.bf16.mxu0 0
  %2594 = vmatpush1.bf16.msra.mxu0 %v1871
  %2595 = vmatprep.subr.bf16.mxu0 0
  %2596 = vmatpush1.bf16.msra.mxu0 %v1872
  %2597 = vmatprep.subr.bf16.mxu0 0
  %2598 = vmatpush1.bf16.msra.mxu0 %v1873
  %2599 = vmatprep.subr.bf16.mxu0 0
  %2600 = vmatpush1.bf16.msra.mxu0 %v1874
  %2601 = vmatprep.mubr.bf16.mxu0 %v169
  %2602 = vmatmul.mubr.bf16.gmra.mrb[0].mxu0 %v168
  %v2603 = vpop.f32.mrb[0].mxu0
  %v2604 = vadd.f32 %v2555, %v2603
  %v2605 = vpop.f32.mrb[0].mxu0
  %v2606 = vpop.f32.mrb[0].mxu0
  %v2607 = vadd.f32 %v2558, %v2606
  %v2608 = vpop.f32.mrb[0].mxu0
  %2609 = vmatprep.mubr.bf16.mxu0 %v201
  %2610 = vmatmul.mubr.bf16.gmra.mrb[0].mxu0 %v200
  %v2611 = vpop.f32.mrb[0].mxu0
  %v2612 = vadd.f32 %v2563, %v2611
  %v2613 = vpop.f32.mrb[0].mxu0
  %v2614 = vpop.f32.mrb[0].mxu0
  %v2615 = vadd.f32 %v2566, %v2614
  %v2616 = vpop.f32.mrb[0].mxu0
  %2617 = vdwg.mxu0
  %2618 = vmatprep.subr.bf16.mxu0 0
  %2619 = vmatpush1.bf16.msra.mxu0 %v1875
  %2620 = vmatprep.subr.bf16.mxu0 0
  %2621 = vmatpush1.bf16.msra.mxu0 %v1876
  %2622 = vmatprep.subr.bf16.mxu0 0
  %2623 = vmatpush1.bf16.msra.mxu0 %v1877
  %2624 = vmatprep.subr.bf16.mxu0 0
  %2625 = vmatpush1.bf16.msra.mxu0 %v1878
  %2626 = vmatprep.subr.bf16.mxu0 0
  %2627 = vmatpush1.bf16.msra.mxu0 %v1879
  %2628 = vmatprep.subr.bf16.mxu0 0
  %2629 = vmatpush1.bf16.msra.mxu0 %v1880
  %2630 = vmatprep.subr.bf16.mxu0 0
  %2631 = vmatpush1.bf16.msra.mxu0 %v1881
  %2632 = vmatprep.subr.bf16.mxu0 0
  %2633 = vmatpush1.bf16.msra.mxu0 %v1882
  %2634 = vmatprep.subr.bf16.mxu0 0
  %2635 = vmatpush1.bf16.msra.mxu0 %v1883
  %2636 = vmatprep.subr.bf16.mxu0 0
  %2637 = vmatpush1.bf16.msra.mxu0 %v1884
  %2638 = vmatprep.subr.bf16.mxu0 0
  %2639 = vmatpush1.bf16.msra.mxu0 %v1885
  %2640 = vmatprep.subr.bf16.mxu0 0
  %2641 = vmatpush1.bf16.msra.mxu0 %v1886
  %2642 = vmatprep.subr.bf16.mxu0 0
  %2643 = vmatpush1.bf16.msra.mxu0 %v1887
  %2644 = vmatprep.subr.bf16.mxu0 0
  %2645 = vmatpush1.bf16.msra.mxu0 %v1888
  %2646 = vmatprep.subr.bf16.mxu0 0
  %2647 = vmatpush1.bf16.msra.mxu0 %v1889
  %2648 = vmatprep.subr.bf16.mxu0 0
  %2649 = vmatpush1.bf16.msra.mxu0 %v1890
  %2650 = vmatprep.mubr.bf16.mxu0 %v171
  %2651 = vmatmul.mubr.bf16.gmra.mrb[0].mxu0 %v170
  %v2652 = vpop.f32.mrb[0].mxu0
  %v2653 = vadd.f32 %v2604, %v2652
  %v2654 = vpop.f32.mrb[0].mxu0
  %v2655 = vpop.f32.mrb[0].mxu0
  %v2656 = vadd.f32 %v2607, %v2655
  %v2657 = vpop.f32.mrb[0].mxu0
  %2658 = vmatprep.mubr.bf16.mxu0 %v203
  %2659 = vmatmul.mubr.bf16.gmra.mrb[0].mxu0 %v202
  %v2660 = vpop.f32.mrb[0].mxu0
  %v2661 = vadd.f32 %v2612, %v2660
  %v2662 = vpop.f32.mrb[0].mxu0
  %v2663 = vpop.f32.mrb[0].mxu0
  %v2664 = vadd.f32 %v2615, %v2663
  %v2665 = vpop.f32.mrb[0].mxu0
  %2666 = vdwg.mxu0
  %2667 = vmatprep.subr.bf16.mxu0 0
  %2668 = vmatpush1.bf16.msra.mxu0 %v1891
  %2669 = vmatprep.subr.bf16.mxu0 0
  %2670 = vmatpush1.bf16.msra.mxu0 %v1892
  %2671 = vmatprep.subr.bf16.mxu0 0
  %2672 = vmatpush1.bf16.msra.mxu0 %v1893
  %2673 = vmatprep.subr.bf16.mxu0 0
  %2674 = vmatpush1.bf16.msra.mxu0 %v1894
  %2675 = vmatprep.subr.bf16.mxu0 0
  %2676 = vmatpush1.bf16.msra.mxu0 %v1895
  %2677 = vmatprep.subr.bf16.mxu0 0
  %2678 = vmatpush1.bf16.msra.mxu0 %v1896
  %2679 = vmatprep.subr.bf16.mxu0 0
  %2680 = vmatpush1.bf16.msra.mxu0 %v1897
  %2681 = vmatprep.subr.bf16.mxu0 0
  %2682 = vmatpush1.bf16.msra.mxu0 %v1898
  %2683 = vmatprep.subr.bf16.mxu0 0
  %2684 = vmatpush1.bf16.msra.mxu0 %v1899
  %2685 = vmatprep.subr.bf16.mxu0 0
  %2686 = vmatpush1.bf16.msra.mxu0 %v1900
  %2687 = vmatprep.subr.bf16.mxu0 0
  %2688 = vmatpush1.bf16.msra.mxu0 %v1901
  %2689 = vmatprep.subr.bf16.mxu0 0
  %2690 = vmatpush1.bf16.msra.mxu0 %v1902
  %2691 = vmatprep.subr.bf16.mxu0 0
  %2692 = vmatpush1.bf16.msra.mxu0 %v1903
  %2693 = vmatprep.subr.bf16.mxu0 0
  %2694 = vmatpush1.bf16.msra.mxu0 %v1904
  %2695 = vmatprep.subr.bf16.mxu0 0
  %2696 = vmatpush1.bf16.msra.mxu0 %v1905
  %2697 = vmatprep.subr.bf16.mxu0 0
  %2698 = vmatpush1.bf16.msra.mxu0 %v1906
  %2699 = vmatprep.mubr.bf16.mxu0 %v173
  %2700 = vmatmul.mubr.bf16.gmra.mrb[0].mxu0 %v172
  %v2701 = vpop.f32.mrb[0].mxu0
  %v2702 = vadd.f32 %v2653, %v2701
  %v2703 = vpop.f32.mrb[0].mxu0
  %v2704 = vpop.f32.mrb[0].mxu0
  %v2705 = vadd.f32 %v2656, %v2704
  %v2706 = vpop.f32.mrb[0].mxu0
  %2707 = vmatprep.mubr.bf16.mxu0 %v205
  %2708 = vmatmul.mubr.bf16.gmra.mrb[0].mxu0 %v204
  %v2709 = vpop.f32.mrb[0].mxu0
  %v2710 = vadd.f32 %v2661, %v2709
  %v2711 = vpop.f32.mrb[0].mxu0
  %v2712 = vpop.f32.mrb[0].mxu0
  %v2713 = vadd.f32 %v2664, %v2712
  %v2714 = vpop.f32.mrb[0].mxu0
  %2715 = vdwg.mxu0
  %2716 = vmatprep.subr.bf16.mxu0 0
  %2717 = vmatpush1.bf16.msra.mxu0 %v1907
  %2718 = vmatprep.subr.bf16.mxu0 0
  %2719 = vmatpush1.bf16.msra.mxu0 %v1908
  %2720 = vmatprep.subr.bf16.mxu0 0
  %2721 = vmatpush1.bf16.msra.mxu0 %v1909
  %2722 = vmatprep.subr.bf16.mxu0 0
  %2723 = vmatpush1.bf16.msra.mxu0 %v1910
  %2724 = vmatprep.subr.bf16.mxu0 0
  %2725 = vmatpush1.bf16.msra.mxu0 %v1911
  %2726 = vmatprep.subr.bf16.mxu0 0
  %2727 = vmatpush1.bf16.msra.mxu0 %v1912
  %2728 = vmatprep.subr.bf16.mxu0 0
  %2729 = vmatpush1.bf16.msra.mxu0 %v1913
  %2730 = vmatprep.subr.bf16.mxu0 0
  %2731 = vmatpush1.bf16.msra.mxu0 %v1914
  %2732 = vmatprep.subr.bf16.mxu0 0
  %2733 = vmatpush1.bf16.msra.mxu0 %v1915
  %2734 = vmatprep.subr.bf16.mxu0 0
  %2735 = vmatpush1.bf16.msra.mxu0 %v1916
  %2736 = vmatprep.subr.bf16.mxu0 0
  %2737 = vmatpush1.bf16.msra.mxu0 %v1917
  %2738 = vmatprep.subr.bf16.mxu0 0
  %2739 = vmatpush1.bf16.msra.mxu0 %v1918
  %2740 = vmatprep.subr.bf16.mxu0 0
  %2741 = vmatpush1.bf16.msra.mxu0 %v1919
  %2742 = vmatprep.subr.bf16.mxu0 0
  %2743 = vmatpush1.bf16.msra.mxu0 %v1920
  %2744 = vmatprep.subr.bf16.mxu0 0
  %2745 = vmatpush1.bf16.msra.mxu0 %v1921
  %2746 = vmatprep.subr.bf16.mxu0 0
  %2747 = vmatpush1.bf16.msra.mxu0 %v1922
  %2748 = vmatprep.mubr.bf16.mxu0 %v175
  %2749 = vmatmul.mubr.bf16.gmra.mrb[0].mxu0 %v174
  %v2750 = vpop.f32.mrb[0].mxu0
  %v2751 = vadd.f32 %v2702, %v2750
  %v2752 = vpop.f32.mrb[0].mxu0
  %v2753 = vpop.f32.mrb[0].mxu0
  %v2754 = vadd.f32 %v2705, %v2753
  %v2755 = vpop.f32.mrb[0].mxu0
  %2756 = vmatprep.mubr.bf16.mxu0 %v207
  %2757 = vmatmul.mubr.bf16.gmra.mrb[0].mxu0 %v206
  %v2758 = vpop.f32.mrb[0].mxu0
  %v2759 = vadd.f32 %v2710, %v2758
  %v2760 = vpop.f32.mrb[0].mxu0
  %v2761 = vpop.f32.mrb[0].mxu0
  %v2762 = vadd.f32 %v2713, %v2761
  %v2763 = vpop.f32.mrb[0].mxu0
  %2764 = vdwg.mxu0
  %2765 = vmatprep.subr.bf16.mxu0 0
  %2766 = vmatpush1.bf16.msra.mxu0 %v1923
  %2767 = vmatprep.subr.bf16.mxu0 0
  %2768 = vmatpush1.bf16.msra.mxu0 %v1924
  %2769 = vmatprep.subr.bf16.mxu0 0
  %2770 = vmatpush1.bf16.msra.mxu0 %v1925
  %2771 = vmatprep.subr.bf16.mxu0 0
  %2772 = vmatpush1.bf16.msra.mxu0 %v1926
  %2773 = vmatprep.subr.bf16.mxu0 0
  %2774 = vmatpush1.bf16.msra.mxu0 %v1927
  %2775 = vmatprep.subr.bf16.mxu0 0
  %2776 = vmatpush1.bf16.msra.mxu0 %v1928
  %2777 = vmatprep.subr.bf16.mxu0 0
  %2778 = vmatpush1.bf16.msra.mxu0 %v1929
  %2779 = vmatprep.subr.bf16.mxu0 0
  %2780 = vmatpush1.bf16.msra.mxu0 %v1930
  %2781 = vmatprep.subr.bf16.mxu0 0
  %2782 = vmatpush1.bf16.msra.mxu0 %v1931
  %2783 = vmatprep.subr.bf16.mxu0 0
  %2784 = vmatpush1.bf16.msra.mxu0 %v1932
  %2785 = vmatprep.subr.bf16.mxu0 0
  %2786 = vmatpush1.bf16.msra.mxu0 %v1933
  %2787 = vmatprep.subr.bf16.mxu0 0
  %2788 = vmatpush1.bf16.msra.mxu0 %v1934
  %2789 = vmatprep.subr.bf16.mxu0 0
  %2790 = vmatpush1.bf16.msra.mxu0 %v1935
  %2791 = vmatprep.subr.bf16.mxu0 0
  %2792 = vmatpush1.bf16.msra.mxu0 %v1936
  %2793 = vmatprep.subr.bf16.mxu0 0
  %2794 = vmatpush1.bf16.msra.mxu0 %v1937
  %2795 = vmatprep.subr.bf16.mxu0 0
  %2796 = vmatpush1.bf16.msra.mxu0 %v1938
  %2797 = vmatprep.mubr.bf16.mxu0 %v177
  %2798 = vmatmul.mubr.bf16.gmra.mrb[0].mxu0 %v176
  %v2799 = vpop.f32.mrb[0].mxu0
  %v2800 = vadd.f32 %v2751, %v2799
  %v2801 = vpop.f32.mrb[0].mxu0
  %v2802 = vpop.f32.mrb[0].mxu0
  %v2803 = vadd.f32 %v2754, %v2802
  %v2804 = vpop.f32.mrb[0].mxu0
  %2805 = vmatprep.mubr.bf16.mxu0 %v209
  %2806 = vmatmul.mubr.bf16.gmra.mrb[0].mxu0 %v208
  %v2807 = vpop.f32.mrb[0].mxu0
  %v2808 = vadd.f32 %v2759, %v2807
  %v2809 = vpop.f32.mrb[0].mxu0
  %v2810 = vpop.f32.mrb[0].mxu0
  %v2811 = vadd.f32 %v2762, %v2810
  %v2812 = vpop.f32.mrb[0].mxu0
  %2813 = vdwg.mxu0
  %2814 = vmatprep.subr.bf16.mxu0 0
  %2815 = vmatpush1.bf16.msra.mxu0 %v1939
  %2816 = vmatprep.subr.bf16.mxu0 0
  %2817 = vmatpush1.bf16.msra.mxu0 %v1940
  %2818 = vmatprep.subr.bf16.mxu0 0
  %2819 = vmatpush1.bf16.msra.mxu0 %v1941
  %2820 = vmatprep.subr.bf16.mxu0 0
  %2821 = vmatpush1.bf16.msra.mxu0 %v1942
  %2822 = vmatprep.subr.bf16.mxu0 0
  %2823 = vmatpush1.bf16.msra.mxu0 %v1943
  %2824 = vmatprep.subr.bf16.mxu0 0
  %2825 = vmatpush1.bf16.msra.mxu0 %v1944
  %2826 = vmatprep.subr.bf16.mxu0 0
  %2827 = vmatpush1.bf16.msra.mxu0 %v1945
  %2828 = vmatprep.subr.bf16.mxu0 0
  %2829 = vmatpush1.bf16.msra.mxu0 %v1946
  %2830 = vmatprep.subr.bf16.mxu0 0
  %2831 = vmatpush1.bf16.msra.mxu0 %v1947
  %2832 = vmatprep.subr.bf16.mxu0 0
  %2833 = vmatpush1.bf16.msra.mxu0 %v1948
  %2834 = vmatprep.subr.bf16.mxu0 0
  %2835 = vmatpush1.bf16.msra.mxu0 %v1949
  %2836 = vmatprep.subr.bf16.mxu0 0
  %2837 = vmatpush1.bf16.msra.mxu0 %v1950
  %2838 = vmatprep.subr.bf16.mxu0 0
  %2839 = vmatpush1.bf16.msra.mxu0 %v1951
  %2840 = vmatprep.subr.bf16.mxu0 0
  %2841 = vmatpush1.bf16.msra.mxu0 %v1952
  %2842 = vmatprep.subr.bf16.mxu0 0
  %2843 = vmatpush1.bf16.msra.mxu0 %v1953
  %2844 = vmatprep.subr.bf16.mxu0 0
  %2845 = vmatpush1.bf16.msra.mxu0 %v1954
  %2846 = vmatprep.mubr.bf16.mxu0 %v179
  %2847 = vmatmul.mubr.bf16.gmra.mrb[0].mxu0 %v178
  %v2848 = vpop.f32.mrb[0].mxu0
  %v2849 = vadd.f32 %v2800, %v2848
  %v2850 = vpop.f32.mrb[0].mxu0
  %v2851 = vpop.f32.mrb[0].mxu0
  %v2852 = vadd.f32 %v2803, %v2851
  %v2853 = vpop.f32.mrb[0].mxu0
  %2854 = vmatprep.mubr.bf16.mxu0 %v211
  %2855 = vmatmul.mubr.bf16.gmra.mrb[0].mxu0 %v210
  %v2856 = vpop.f32.mrb[0].mxu0
  %v2857 = vadd.f32 %v2808, %v2856
  %v2858 = vpop.f32.mrb[0].mxu0
  %v2859 = vpop.f32.mrb[0].mxu0
  %v2860 = vadd.f32 %v2811, %v2859
  %v2861 = vpop.f32.mrb[0].mxu0
  %2862 = vdwg.mxu0
  %2863 = vmatprep.subr.bf16.mxu0 0
  %2864 = vmatpush1.bf16.msra.mxu0 %v1955
  %2865 = vmatprep.subr.bf16.mxu0 0
  %2866 = vmatpush1.bf16.msra.mxu0 %v1956
  %2867 = vmatprep.subr.bf16.mxu0 0
  %2868 = vmatpush1.bf16.msra.mxu0 %v1957
  %2869 = vmatprep.subr.bf16.mxu0 0
  %2870 = vmatpush1.bf16.msra.mxu0 %v1958
  %2871 = vmatprep.subr.bf16.mxu0 0
  %2872 = vmatpush1.bf16.msra.mxu0 %v1959
  %2873 = vmatprep.subr.bf16.mxu0 0
  %2874 = vmatpush1.bf16.msra.mxu0 %v1960
  %2875 = vmatprep.subr.bf16.mxu0 0
  %2876 = vmatpush1.bf16.msra.mxu0 %v1961
  %2877 = vmatprep.subr.bf16.mxu0 0
  %2878 = vmatpush1.bf16.msra.mxu0 %v1962
  %2879 = vmatprep.subr.bf16.mxu0 0
  %2880 = vmatpush1.bf16.msra.mxu0 %v1963
  %2881 = vmatprep.subr.bf16.mxu0 0
  %2882 = vmatpush1.bf16.msra.mxu0 %v1964
  %2883 = vmatprep.subr.bf16.mxu0 0
  %2884 = vmatpush1.bf16.msra.mxu0 %v1965
  %2885 = vmatprep.subr.bf16.mxu0 0
  %2886 = vmatpush1.bf16.msra.mxu0 %v1966
  %2887 = vmatprep.subr.bf16.mxu0 0
  %2888 = vmatpush1.bf16.msra.mxu0 %v1967
  %2889 = vmatprep.subr.bf16.mxu0 0
  %2890 = vmatpush1.bf16.msra.mxu0 %v1968
  %2891 = vmatprep.subr.bf16.mxu0 0
  %2892 = vmatpush1.bf16.msra.mxu0 %v1969
  %2893 = vmatprep.subr.bf16.mxu0 0
  %2894 = vmatpush1.bf16.msra.mxu0 %v1970
  %2895 = vmatprep.mubr.bf16.mxu0 %v181
  %2896 = vmatmul.mubr.bf16.gmra.mrb[0].mxu0 %v180
  %v2897 = vpop.f32.mrb[0].mxu0
  %v2898 = vadd.f32 %v2849, %v2897
  %v2899 = vpop.f32.mrb[0].mxu0
  %v2900 = vpop.f32.mrb[0].mxu0
  %v2901 = vadd.f32 %v2852, %v2900
  %v2902 = vpop.f32.mrb[0].mxu0
  %2903 = vmatprep.mubr.bf16.mxu0 %v213
  %2904 = vmatmul.mubr.bf16.gmra.mrb[0].mxu0 %v212
  %v2905 = vpop.f32.mrb[0].mxu0
  %v2906 = vadd.f32 %v2857, %v2905
  %v2907 = vpop.f32.mrb[0].mxu0
  %v2908 = vpop.f32.mrb[0].mxu0
  %v2909 = vadd.f32 %v2860, %v2908
  %v2910 = vpop.f32.mrb[0].mxu0
  %2911 = vdwg.mxu0
  %2912 = vmatprep.subr.bf16.mxu0 0
  %2913 = vmatpush1.bf16.msra.mxu0 %v1971
  %2914 = vmatprep.subr.bf16.mxu0 0
  %2915 = vmatpush1.bf16.msra.mxu0 %v1972
  %2916 = vmatprep.subr.bf16.mxu0 0
  %2917 = vmatpush1.bf16.msra.mxu0 %v1973
  %2918 = vmatprep.subr.bf16.mxu0 0
  %2919 = vmatpush1.bf16.msra.mxu0 %v1974
  %2920 = vmatprep.subr.bf16.mxu0 0
  %2921 = vmatpush1.bf16.msra.mxu0 %v1975
  %2922 = vmatprep.subr.bf16.mxu0 0
  %2923 = vmatpush1.bf16.msra.mxu0 %v1976
  %2924 = vmatprep.subr.bf16.mxu0 0
  %2925 = vmatpush1.bf16.msra.mxu0 %v1977
  %2926 = vmatprep.subr.bf16.mxu0 0
  %2927 = vmatpush1.bf16.msra.mxu0 %v1978
  %2928 = vmatprep.subr.bf16.mxu0 0
  %2929 = vmatpush1.bf16.msra.mxu0 %v1979
  %2930 = vmatprep.subr.bf16.mxu0 0
  %2931 = vmatpush1.bf16.msra.mxu0 %v1980
  %2932 = vmatprep.subr.bf16.mxu0 0
  %2933 = vmatpush1.bf16.msra.mxu0 %v1981
  %2934 = vmatprep.subr.bf16.mxu0 0
  %2935 = vmatpush1.bf16.msra.mxu0 %v1982
  %2936 = vmatprep.subr.bf16.mxu0 0
  %2937 = vmatpush1.bf16.msra.mxu0 %v1983
  %2938 = vmatprep.subr.bf16.mxu0 0
  %2939 = vmatpush1.bf16.msra.mxu0 %v1984
  %2940 = vmatprep.subr.bf16.mxu0 0
  %2941 = vmatpush1.bf16.msra.mxu0 %v1985
  %2942 = vmatprep.subr.bf16.mxu0 0
  %2943 = vmatpush1.bf16.msra.mxu0 %v1986
  %2944 = vmatprep.mubr.bf16.mxu0 %v183
  %2945 = vmatmul.mubr.bf16.gmra.mrb[0].mxu0 %v182
  %v2946 = vpop.f32.mrb[0].mxu0
  %v2947 = vadd.f32 %v2898, %v2946
  %v2948 = vpop.f32.mrb[0].mxu0
  %v2949 = vpop.f32.mrb[0].mxu0
  %v2950 = vadd.f32 %v2901, %v2949
  %v2951 = vpop.f32.mrb[0].mxu0
  %2952 = vmatprep.mubr.bf16.mxu0 %v215
  %2953 = vmatmul.mubr.bf16.gmra.mrb[0].mxu0 %v214
  %v2954 = vpop.f32.mrb[0].mxu0
  %v2955 = vadd.f32 %v2906, %v2954
  %v2956 = vpop.f32.mrb[0].mxu0
  %v2957 = vpop.f32.mrb[0].mxu0
  %v2958 = vadd.f32 %v2909, %v2957
  %v2959 = vpop.f32.mrb[0].mxu0
  %2960 = vdwg.mxu0
  %2961 = vmatprep.subr.bf16.mxu0 0
  %2962 = vmatpush1.bf16.msra.mxu0 %v1987
  %2963 = vmatprep.subr.bf16.mxu0 0
  %2964 = vmatpush1.bf16.msra.mxu0 %v1988
  %2965 = vmatprep.subr.bf16.mxu0 0
  %2966 = vmatpush1.bf16.msra.mxu0 %v1989
  %2967 = vmatprep.subr.bf16.mxu0 0
  %2968 = vmatpush1.bf16.msra.mxu0 %v1990
  %2969 = vmatprep.subr.bf16.mxu0 0
  %2970 = vmatpush1.bf16.msra.mxu0 %v1991
  %2971 = vmatprep.subr.bf16.mxu0 0
  %2972 = vmatpush1.bf16.msra.mxu0 %v1992
  %2973 = vmatprep.subr.bf16.mxu0 0
  %2974 = vmatpush1.bf16.msra.mxu0 %v1993
  %2975 = vmatprep.subr.bf16.mxu0 0
  %2976 = vmatpush1.bf16.msra.mxu0 %v1994
  %2977 = vmatprep.subr.bf16.mxu0 0
  %2978 = vmatpush1.bf16.msra.mxu0 %v1995
  %2979 = vmatprep.subr.bf16.mxu0 0
  %2980 = vmatpush1.bf16.msra.mxu0 %v1996
  %2981 = vmatprep.subr.bf16.mxu0 0
  %2982 = vmatpush1.bf16.msra.mxu0 %v1997
  %2983 = vmatprep.subr.bf16.mxu0 0
  %2984 = vmatpush1.bf16.msra.mxu0 %v1998
  %2985 = vmatprep.subr.bf16.mxu0 0
  %2986 = vmatpush1.bf16.msra.mxu0 %v1999
  %2987 = vmatprep.subr.bf16.mxu0 0
  %2988 = vmatpush1.bf16.msra.mxu0 %v2000
  %2989 = vmatprep.subr.bf16.mxu0 0
  %2990 = vmatpush1.bf16.msra.mxu0 %v2001
  %2991 = vmatprep.subr.bf16.mxu0 0
  %2992 = vmatpush1.bf16.msra.mxu0 %v2002
  %2993 = vmatprep.mubr.bf16.mxu0 %v185
  %2994 = vmatmul.mubr.bf16.gmra.mrb[0].mxu0 %v184
  %v2995 = vpop.f32.mrb[0].mxu0
  %v2996 = vadd.f32 %v2947, %v2995
  %v2997 = vpop.f32.mrb[0].mxu0
  %v2998 = vpop.f32.mrb[0].mxu0
  %v2999 = vadd.f32 %v2950, %v2998
  %v3000 = vpop.f32.mrb[0].mxu0
  %3001 = vmatprep.mubr.bf16.mxu0 %v217
  %3002 = vmatmul.mubr.bf16.gmra.mrb[0].mxu0 %v216
  %v3003 = vpop.f32.mrb[0].mxu0
  %v3004 = vadd.f32 %v2955, %v3003
  %v3005 = vpop.f32.mrb[0].mxu0
  %v3006 = vpop.f32.mrb[0].mxu0
  %v3007 = vadd.f32 %v2958, %v3006
  %v3008 = vpop.f32.mrb[0].mxu0
  %3009 = vdwg.mxu0
  %3010 = vmatprep.subr.bf16.mxu0 0
  %3011 = vmatpush1.bf16.msra.mxu0 %v2003
  %3012 = vmatprep.subr.bf16.mxu0 0
  %3013 = vmatpush1.bf16.msra.mxu0 %v2004
  %3014 = vmatprep.subr.bf16.mxu0 0
  %3015 = vmatpush1.bf16.msra.mxu0 %v2005
  %3016 = vmatprep.subr.bf16.mxu0 0
  %3017 = vmatpush1.bf16.msra.mxu0 %v2006
  %3018 = vmatprep.subr.bf16.mxu0 0
  %3019 = vmatpush1.bf16.msra.mxu0 %v2007
  %3020 = vmatprep.subr.bf16.mxu0 0
  %3021 = vmatpush1.bf16.msra.mxu0 %v2008
  %3022 = vmatprep.subr.bf16.mxu0 0
  %3023 = vmatpush1.bf16.msra.mxu0 %v2009
  %3024 = vmatprep.subr.bf16.mxu0 0
  %3025 = vmatpush1.bf16.msra.mxu0 %v2010
  %3026 = vmatprep.subr.bf16.mxu0 0
  %3027 = vmatpush1.bf16.msra.mxu0 %v2011
  %3028 = vmatprep.subr.bf16.mxu0 0
  %3029 = vmatpush1.bf16.msra.mxu0 %v2012
  %3030 = vmatprep.subr.bf16.mxu0 0
  %3031 = vmatpush1.bf16.msra.mxu0 %v2013
  %3032 = vmatprep.subr.bf16.mxu0 0
  %3033 = vmatpush1.bf16.msra.mxu0 %v2014
  %3034 = vmatprep.subr.bf16.mxu0 0
  %3035 = vmatpush1.bf16.msra.mxu0 %v2015
  %3036 = vmatprep.subr.bf16.mxu0 0
  %3037 = vmatpush1.bf16.msra.mxu0 %v2016
  %3038 = vmatprep.subr.bf16.mxu0 0
  %3039 = vmatpush1.bf16.msra.mxu0 %v2017
  %3040 = vmatprep.subr.bf16.mxu0 0
  %3041 = vmatpush1.bf16.msra.mxu0 %v2018
  %3042 = vmatprep.mubr.bf16.mxu0 %v187
  %3043 = vmatmul.mubr.bf16.gmra.mrb[0].mxu0 %v186
  %v3044 = vpop.f32.mrb[0].mxu0
  %v3045 = vadd.f32 %v2996, %v3044
  %v3046 = vpop.f32.mrb[0].mxu0
  %v3047 = vpop.f32.mrb[0].mxu0
  %v3048 = vadd.f32 %v2999, %v3047
  %v3049 = vpop.f32.mrb[0].mxu0
  %3050 = vmatprep.mubr.bf16.mxu0 %v219
  %3051 = vmatmul.mubr.bf16.gmra.mrb[0].mxu0 %v218
  %v3052 = vpop.f32.mrb[0].mxu0
  %v3053 = vadd.f32 %v3004, %v3052
  %v3054 = vpop.f32.mrb[0].mxu0
  %v3055 = vpop.f32.mrb[0].mxu0
  %v3056 = vadd.f32 %v3007, %v3055
  %v3057 = vpop.f32.mrb[0].mxu0
  %3058 = vdwg.mxu0
  %v3059 = vmax.f32 %v3045, 0.0
  %v3060 = vmax.f32 %v3048, 0.0
  %v3061 = vmax.f32 %v3053, 0.0
  %v3062 = vmax.f32 %v3056, 0.0
  %v3063 = vpack.c.bf16 %v3060, %v3059
  %v3064 = vpack.c.bf16 %v3062, %v3061
  %v3065 = vld [vmem:[%s3] sm:$0xf]
  %v3066 = vld [vmem:[%s3 + $0x4] sm:$0xf]
  %v3067 = vld [vmem:[%s3 + $0x8] sm:$0xf]
  %v3068 = vld [vmem:[%s3 + $0xc] sm:$0xf]
  %v3069 = vld [vmem:[%s3 + $0x10] sm:$0xf]
  %v3070 = vld [vmem:[%s3 + $0x14] sm:$0xf]
  %v3071 = vld [vmem:[%s3 + $0x18] sm:$0xf]
  %v3072 = vld [vmem:[%s3 + $0x1c] sm:$0xf]
  %v3073 = vld [vmem:[%s3 + $0x20] sm:$0xf]
  %v3074 = vld [vmem:[%s3 + $0x24] sm:$0xf]
  %v3075 = vld [vmem:[%s3 + $0x28] sm:$0xf]
  %v3076 = vld [vmem:[%s3 + $0x2c] sm:$0xf]
  %v3077 = vld [vmem:[%s3 + $0x30] sm:$0xf]
  %v3078 = vld [vmem:[%s3 + $0x34] sm:$0xf]
  %v3079 = vld [vmem:[%s3 + $0x38] sm:$0xf]
  %v3080 = vld [vmem:[%s3 + $0x3c] sm:$0xf]
  %v3081 = vld [vmem:[%s4] sm:$0x1]
  %v3083 = vlaneseq
  %v3084 = vshrl.u32 %v3083, 7
  %v3085 = vsub.s32 0, %v3084
  %v3086 = vrot.slane %v3081, %v3085
  %v3104 = vunpack.c.l.b16 %v3065
  %v3105 = vunpack.c.l.b16 %v3066
  %v3106 = vunpack.c.l.b16 %v3067
  %v3107 = vunpack.c.l.b16 %v3068
  %v3108 = vunpack.c.l.b16 %v3069
  %v3109 = vunpack.c.l.b16 %v3070
  %v3110 = vunpack.c.l.b16 %v3071
  %v3111 = vunpack.c.l.b16 %v3072
  %v3112 = vunpack.c.l.b16 %v3073
  %v3113 = vunpack.c.l.b16 %v3074
  %v3114 = vunpack.c.l.b16 %v3075
  %v3115 = vunpack.c.l.b16 %v3076
  %v3116 = vunpack.c.l.b16 %v3077
  %v3117 = vunpack.c.l.b16 %v3078
  %v3118 = vunpack.c.l.b16 %v3079
  %v3119 = vunpack.c.l.b16 %v3080
  %v3120 = vpack.c.b16 %v3105, %v3104
  %v3121 = vpack.c.b16 %v3107, %v3106
  %v3122 = vpack.c.b16 %v3109, %v3108
  %v3123 = vpack.c.b16 %v3111, %v3110
  %v3124 = vpack.c.b16 %v3113, %v3112
  %v3125 = vpack.c.b16 %v3115, %v3114
  %v3126 = vpack.c.b16 %v3117, %v3116
  %v3127 = vpack.c.b16 %v3119, %v3118
  %3136 = vmatprep.subr.bf16.mxu0 0
  %3137 = vmatpush1.bf16.msra.mxu0 %v3120
  %3138 = vmatprep.subr.bf16.mxu0 0
  %3139 = vmatpush1.bf16.msra.mxu0 %v3121
  %3140 = vmatprep.subr.bf16.mxu0 0
  %3141 = vmatpush1.bf16.msra.mxu0 %v3122
  %3142 = vmatprep.subr.bf16.mxu0 0
  %3143 = vmatpush1.bf16.msra.mxu0 %v3123
  %3144 = vmatprep.subr.bf16.mxu0 0
  %3145 = vmatpush1.bf16.msra.mxu0 %v3124
  %3146 = vmatprep.subr.bf16.mxu0 0
  %3147 = vmatpush1.bf16.msra.mxu0 %v3125
  %3148 = vmatprep.subr.bf16.mxu0 0
  %3149 = vmatpush1.bf16.msra.mxu0 %v3126
  %3150 = vmatprep.subr.bf16.mxu0 0
  %3151 = vmatpush1.bf16.msra.mxu0 %v3127
  %3152 = vmatprep.subr.bf16.mxu0 0
  %3153 = vmatpush1.bf16.msra.mxu0 0
  %3154 = vmatprep.subr.bf16.mxu0 0
  %3155 = vmatpush1.bf16.msra.mxu0 0
  %3156 = vmatprep.subr.bf16.mxu0 0
  %3157 = vmatpush1.bf16.msra.mxu0 0
  %3158 = vmatprep.subr.bf16.mxu0 0
  %3159 = vmatpush1.bf16.msra.mxu0 0
  %3160 = vmatprep.subr.bf16.mxu0 0
  %3161 = vmatpush1.bf16.msra.mxu0 0
  %3162 = vmatprep.subr.bf16.mxu0 0
  %3163 = vmatpush1.bf16.msra.mxu0 0
  %3164 = vmatprep.subr.bf16.mxu0 0
  %3165 = vmatpush1.bf16.msra.mxu0 0
  %3166 = vmatprep.subr.bf16.mxu0 0
  %3167 = vmatpush1.bf16.msra.mxu0 0
  %3168 = vmatprep.mubr.bf16.mxu0 0
  %3169 = vmatmul.mubr.bf16.gmra.mrb[0].mxu0 %v3063
  %v3170 = vpop.f32.mrb[0].mxu0
  %v3171 = vadd.f32 %v3086, %v3170
  %v3172 = vpop.f32.mrb[0].mxu0
  %v3173 = vpop.f32.mrb[0].mxu0
  %v3174 = vadd.f32 %v3086, %v3173
  %v3175 = vpop.f32.mrb[0].mxu0
  %3176 = vmatprep.mubr.bf16.mxu0 0
  %3177 = vmatmul.mubr.bf16.gmra.mrb[0].mxu0 %v3064
  %v3178 = vpop.f32.mrb[0].mxu0
  %v3179 = vadd.f32 %v3086, %v3178
  %v3180 = vpop.f32.mrb[0].mxu0
  %v3181 = vpop.f32.mrb[0].mxu0
  %v3182 = vadd.f32 %v3086, %v3181
  %v3183 = vpop.f32.mrb[0].mxu0
  %3184 = vdwg.mxu0
  %v3185 = vmax.f32 %v3171, 0.0
  %v3186 = vmax.f32 %v3174, 0.0
  %v3187 = vmax.f32 %v3179, 0.0
  %v3188 = vmax.f32 %v3182, 0.0
  %v3189 = vld [vmem:[%s5] sm:$0x1]
  %v3191 = vlaneseq
  %v3192 = vshrl.u32 %v3191, 7
  %v3193 = vsub.s32 0, %v3192
  %v3194 = vrot.slane %v3189, %v3193
  %v3196 = vmul.f32 %v3185, %v3194
  %v3197 = vmul.f32 %v3186, %v3194
  %v3198 = vmul.f32 %v3187, %v3194
  %v3199 = vmul.f32 %v3188, %v3194
  %3200 = vadd.xlane.f32.xlu0 %v3196
  %v3201 = vpop.xlane.xlu0 %3200
  %3202 = vadd.xlane.f32.xlu0 %v3197
  %v3203 = vpop.xlane.xlu0 %3202
  %3204 = vadd.xlane.f32.xlu0 %v3198
  %v3205 = vpop.xlane.xlu0 %3204
  %3206 = vadd.xlane.f32.xlu0 %v3199
  %v3207 = vpop.xlane.xlu0 %3206
  %s3208 = sld [smem:[#allocation2]]
  %v3209 = vstv %s3208
  %v3210 = vadd.f32 %v3201, %v3209
  %v3211 = vadd.f32 %v3203, %v3209
  %v3212 = vadd.f32 %v3205, %v3209
  %v3213 = vadd.f32 %v3207, %v3209
  %v3214 = vxor.u32 %v3210, 2147483648
  %v3215 = vxor.u32 %v3211, 2147483648
  %v3216 = vxor.u32 %v3212, 2147483648
  %v3217 = vxor.u32 %v3213, 2147483648
  %v3218 = vmul.f32 %v3214, 1.442695
  %v3219 = vpow.pop %v3218
  %v3220 = vmul.f32 %v3215, 1.442695
  %v3221 = vpow.pop %v3220
  %v3222 = vmul.f32 %v3216, 1.442695
  %v3223 = vpow.pop %v3222
  %v3224 = vmul.f32 %v3217, 1.442695
  %v3225 = vpow.pop %v3224
  %v3226 = vadd.f32 %v3219, 1.0
  %v3227 = vadd.f32 %v3221, 1.0
  %v3228 = vadd.f32 %v3223, 1.0
  %v3229 = vadd.f32 %v3225, 1.0
  %v3230 = vrcp.pop %v3226
  %v3231 = vmul.f32 1.0, %v3230
  %v3232 = vrcp.pop %v3227
  %v3233 = vmul.f32 1.0, %v3232
  %v3234 = vrcp.pop %v3228
  %v3235 = vmul.f32 1.0, %v3234
  %v3236 = vrcp.pop %v3229
  %v3237 = vmul.f32 1.0, %v3236
  %vm3238 = vcmask 7168
  %3239 = vst.msk [vmem:[%s7] sm:$0xff] %vm3238, %v3231
  %3240 = vst.msk [vmem:[%s7 + $0x8] sm:$0xff] %vm3238, %v3233
  %3241 = vst.msk [vmem:[%s7 + $0x10] sm:$0xff] %vm3238, %v3235
  %3242 = vst.msk [vmem:[%s7 + $0x18] sm:$0xff] %vm3238, %v3237
  // Predicated region
  $region30: #{discriminator_forward.1} parent=0 // pred_check
    _
  $region31: #{discriminator_forward.1} parent=0 // pred_check_branch
    %3244 = sbr.rel (0) target = $region33
  $region32: #{discriminator_forward.1} parent=0 // pred_region
    _
  $region33: #{discriminator_forward.1} parent=0 // pred_fallthru
    _
  // Predicated region
  $region34: #{discriminator_forward.1} parent=0 // pred_check
    _
  $region35: #{discriminator_forward.1} parent=0 // pred_check_branch
    %3246 = sbr.rel (0) target = $region37
  $region36: #{discriminator_forward.1} parent=0 // pred_region
    _
  $region37: #{discriminator_forward.1} parent=0 // pred_fallthru
    _

</llo_original>
